<compile_context>
chip_gen: v7x
topology: tpu7x:2x2x1
jax: 0.10.0
libtpu: 0.0.40
codegen_flags: <defaults>
</compile_context>

<pallas_src>
import jax
import jax.numpy as jnp
from jax import lax
from jax.experimental import pallas as pl
from jax.experimental.pallas import tpu as pltpu

K = 7        # conv kernel size
PAD = 3      # "same" padding
MAX_B_BLK = 8  # fold at most one vreg's worth of sublanes of batch per step


def _make_kernel(B_BLK, C, H, W):
    HW = H * W
    inv_c = 1.0 / float(C)          # compile-time reciprocal for the mean
    pow2_w = (W & (W - 1)) == 0

    def kernel(w_ref, b_ref, x_ref, out_ref, scale_ref, avg_s, max_s, scale_s):
        """w_ref:   SMEM (2*K*K,) f32 flattened conv weight (avg taps, then max taps)
           b_ref:   SMEM (1,) f32 conv bias
           x_ref:   VMEM (B_BLK, C, HW) block (lane-dense spatial axis)
           out_ref: VMEM (B_BLK, C, HW)
           scale_ref: VMEM (B_BLK, HW)
           avg_s/max_s/scale_s: VMEM (B_BLK, HW) f32 scratch
        """
        # --- Channel statistics (torch.mean / torch.max over dim=1), f32.
        # One batch row at a time (rank-2 sublane reduce), assembled into
        # sublane-dense (B_BLK, HW) maps through VMEM scratch.
        for b in range(B_BLK):
            xb = x_ref[b].astype(jnp.float32)                        # (C, HW)
            avg_s[pl.ds(b, 1), :] = jnp.sum(xb, axis=0, keepdims=True) * inv_c
            max_s[pl.ds(b, 1), :] = jnp.max(xb, axis=0, keepdims=True)
        avg = avg_s[...]                                             # (B_BLK, HW)
        mx = max_s[...]                                              # (B_BLK, HW)

        # Flat-position coordinates for border masking of shifted taps.
        col = lax.broadcasted_iota(jnp.int32, (B_BLK, HW), 1)        # p = h*W + w
        if pow2_w:
            w_out = col & (W - 1)                                    # w coordinate
        else:
            # TODO(synk): non-power-of-two W relies on vector integer mod lowering.
            w_out = col % W

        # w-direction boundary masks: 6 compares total, hoisted out of the kh
        # loop and reused across all 7 kh values.
        w_masks = {}
        for dw in range(-PAD, PAD + 1):
            if dw > 0:
                w_masks[dw] = w_out < (W - dw)
            elif dw < 0:
                w_masks[dw] = w_out >= (-dw)
            else:
                w_masks[dw] = None

        # 4 partial accumulators break the 49-tap serial add chain; the bias
        # seeds accumulator 0 directly.
        accs = [jnp.full((B_BLK, HW), b_ref[0], jnp.float32)] + \
               [jnp.zeros((B_BLK, HW), jnp.float32) for _ in range(3)]

        t = 0
        for kh in range(K):
            dh = kh - PAD
            # h-border mask on the flat index (h = p // W): once per kh.
            if dh > 0:
                h_mask = col < (H - dh) * W
            elif dh < 0:
                h_mask = col >= (-dh) * W
            else:
                h_mask = None
            for kw in range(K):
                dw = kw - PAD

                # Per-tap scalar weight reads (in-loop sld is free; avoids
                # spilling 98 live scalars past the sreg file).
                w_a = w_ref[kh * K + kw]
                w_m = w_ref[K * K + kh * K + kw]

                mask = h_mask
                wm = w_masks[dw]
                if wm is not None:
                    mask = wm if mask is None else (mask & wm)

                # Combine the two stat channels with their scalar weights first
                # (roll is linear), then one XLU roll per tap.
                tap = w_a * avg + w_m * mx                           # (B_BLK, HW)
                s = dh * W + dw                                      # flat offset
                if s != 0:
                    # want tap'[p] = tap[p + s]  ->  np.roll-style shift of -s
                    tap = pltpu.roll(tap, shift=(-s) % HW, axis=1)
                if mask is not None:
                    tap = jnp.where(mask, tap, 0.0)                  # zero padding
                accs[t % 4] = accs[t % 4] + tap
                t += 1

        conv = (accs[0] + accs[1]) + (accs[2] + accs[3])             # (B_BLK, HW)
        scale = jax.nn.sigmoid(conv)                                 # EUP

        scale_s[...] = scale
        scale_ref[...] = scale.astype(scale_ref.dtype)

        # Elementwise rescale: (C, HW) * (1, HW) sublane broadcast per row,
        # lane-dense unmasked stores.
        for b in range(B_BLK):
            out_ref[b] = (x_ref[b].astype(jnp.float32)
                          * scale_s[pl.ds(b, 1), :]).astype(out_ref.dtype)

    return kernel


@jax.jit
def spatial_attention(x, conv_w, conv_b):
    """x: (B, C, H, W); conv_w: (1, 2, 7, 7); conv_b: (1,).
    Returns (x * scale, scale) exactly like the PyTorch module."""
    B, C, H, W = x.shape
    HW = H * W
    B_BLK = min(B, MAX_B_BLK)
    n_steps = pl.cdiv(B, B_BLK)

    # Lane-dense layout: fold (H, W) -> H*W on the trailing (lane) axis.
    xf = x.reshape(B, C, HW)
    w_flat = conv_w.reshape(-1).astype(jnp.float32)                  # (98,)
    bias = conv_b.astype(jnp.float32)                                # (1,)

    out_f, scale_f = pl.pallas_call(
        _make_kernel(B_BLK, C, H, W),
        out_shape=(
            jax.ShapeDtypeStruct((B, C, HW), x.dtype),
            jax.ShapeDtypeStruct((B, HW), x.dtype),
        ),
        grid=(n_steps,),
        in_specs=[
            pl.BlockSpec(memory_space=pltpu.MemorySpace.SMEM),       # conv weights
            pl.BlockSpec(memory_space=pltpu.MemorySpace.SMEM),       # conv bias
            pl.BlockSpec((B_BLK, C, HW), lambda i: (i, 0, 0)),
        ],
        out_specs=(
            pl.BlockSpec((B_BLK, C, HW), lambda i: (i, 0, 0)),
            pl.BlockSpec((B_BLK, HW), lambda i: (i, 0)),
        ),
        scratch_shapes=[
            pltpu.VMEM((B_BLK, HW), jnp.float32),                    # avg map
            pltpu.VMEM((B_BLK, HW), jnp.float32),                    # max map
            pltpu.VMEM((B_BLK, HW), jnp.float32),                    # scale (f32)
        ],
        compiler_params=pltpu.CompilerParams(
            dimension_semantics=(("parallel",) if n_steps > 1 else ("arbitrary",))),
    )(w_flat, bias, xf)

    return out_f.reshape(B, C, H, W), scale_f.reshape(B, 1, H, W)


def reference(x, conv_w, conv_b):
    """Pure-JAX reference replicating the PyTorch forward."""
    avg = jnp.mean(x, axis=1, keepdims=True)
    mx = jnp.max(x, axis=1, keepdims=True)
    xc = jnp.concatenate([avg, mx], axis=1)
    conv = lax.conv_general_dilated(
        xc, conv_w, window_strides=(1, 1),
        padding=((PAD, PAD), (PAD, PAD)),
        dimension_numbers=("NCHW", "OIHW", "NCHW"),
    ) + conv_b.reshape(1, 1, 1, 1)
    scale = jax.nn.sigmoid(conv)
    return x * scale, scale


if __name__ == "__main__":
    key = jax.random.PRNGKey(0)
    kx, kw, kb = jax.random.split(key, 3)

    B, C, H, W = 2, 4, 16, 16
    x = jax.random.normal(kx, (B, C, H, W), dtype=jnp.float32)
    # Deterministic synthetic parameters (Conv2d(2, 1, kernel_size=7) shapes).
    conv_w = 0.1 * jax.random.normal(kw, (1, 2, K, K), dtype=jnp.float32)
    conv_b = 0.05 * jax.random.normal(kb, (1,), dtype=jnp.float32)

    out, scale = spatial_attention(x, conv_w, conv_b)
    out = jax.block_until_ready(out)
    scale = jax.block_until_ready(scale)

    out_ref, scale_ref = reference(x, conv_w, conv_b)
    assert out.shape == (B, C, H, W) and scale.shape == (B, 1, H, W)
    assert jnp.allclose(out, out_ref, rtol=1e-5, atol=1e-5)
    assert jnp.allclose(scale, scale_ref, rtol=1e-5, atol=1e-5)

    print("KERNEL_OK")
</pallas_src>

<mosaic_0001>
module attributes {stable_mosaic.version = 11 : i64} {
  func.func @kernel(%arg0: i32, %arg1: memref<98xf32, #tpu.memory_space<smem>>, %arg2: memref<1xf32, #tpu.memory_space<smem>>, %arg3: memref<2x4x256xf32, #tpu.memory_space<vmem>>, %arg4: memref<2x4x256xf32, #tpu.memory_space<vmem>>, %arg5: memref<2x256xf32, #tpu.memory_space<vmem>>, %arg6: memref<2x256xf32, #tpu.memory_space<vmem>>, %arg7: memref<2x256xf32, #tpu.memory_space<vmem>>, %arg8: memref<2x256xf32, #tpu.memory_space<vmem>>) attributes {dimension_semantics = [#tpu.dimension_semantics<arbitrary>], iteration_bounds = array<i64: 1>, scalar_prefetch = 0 : i64, scratch_operands = 3 : i64, tpu.core_type = #tpu.core_type<tc>, window_params = [{transform_indices = @transform_0, window_bounds = array<i64: 98>}, {transform_indices = @transform_1, window_bounds = array<i64: 1>}, {transform_indices = @transform_2, window_bounds = array<i64: 2, 4, 256>}, {transform_indices = @transform_3, window_bounds = array<i64: 2, 4, 256>}, {transform_indices = @transform_4, window_bounds = array<i64: 2, 256>}]} {
    %c0 = arith.constant 0 : index
    %c0_0 = arith.constant 0 : index
    %c0_1 = arith.constant 0 : index
    %0 = vector.load %arg3[%c0, %c0_0, %c0_1] : memref<2x4x256xf32, #tpu.memory_space<vmem>>, vector<1x4x256xf32>
    %1 = vector.shape_cast %0 : vector<1x4x256xf32> to vector<4x256xf32>
    %cst = arith.constant dense<0.000000e+00> : vector<256xf32>
    %2 = vector.multi_reduction <add>, %1, %cst [0] : vector<4x256xf32> to vector<256xf32>
    %3 = vector.shape_cast %2 : vector<256xf32> to vector<1x256xf32>
    %cst_2 = arith.constant 2.500000e-01 : f32
    %4 = vector.broadcast %cst_2 : f32 to vector<1x256xf32>
    %5 = arith.mulf %3, %4 : vector<1x256xf32>
    %c0_3 = arith.constant 0 : index
    %c0_4 = arith.constant 0 : index
    %6 = vector.load %arg6[%c0_3, %c0_4] : memref<2x256xf32, #tpu.memory_space<vmem>>, vector<1x256xf32>
    tpu.vector_store %arg6[%c0_3, %c0_4], %5 {strides = array<i32>} : memref<2x256xf32, #tpu.memory_space<vmem>>, vector<1x256xf32>,
    %cst_5 = arith.constant dense<0xFF800000> : vector<256xf32>
    %7 = vector.multi_reduction <maximumf>, %1, %cst_5 [0] : vector<4x256xf32> to vector<256xf32>
    %8 = vector.shape_cast %7 : vector<256xf32> to vector<1x256xf32>
    %c0_6 = arith.constant 0 : index
    %c0_7 = arith.constant 0 : index
    %9 = vector.load %arg7[%c0_6, %c0_7] : memref<2x256xf32, #tpu.memory_space<vmem>>, vector<1x256xf32>
    tpu.vector_store %arg7[%c0_6, %c0_7], %8 {strides = array<i32>} : memref<2x256xf32, #tpu.memory_space<vmem>>, vector<1x256xf32>,
    %c1 = arith.constant 1 : index
    %c0_8 = arith.constant 0 : index
    %c0_9 = arith.constant 0 : index
    %10 = vector.load %arg3[%c1, %c0_8, %c0_9] : memref<2x4x256xf32, #tpu.memory_space<vmem>>, vector<1x4x256xf32>
    %11 = vector.shape_cast %10 : vector<1x4x256xf32> to vector<4x256xf32>
    %cst_10 = arith.constant dense<0.000000e+00> : vector<256xf32>
    %12 = vector.multi_reduction <add>, %11, %cst_10 [0] : vector<4x256xf32> to vector<256xf32>
    %13 = vector.shape_cast %12 : vector<256xf32> to vector<1x256xf32>
    %cst_11 = arith.constant 2.500000e-01 : f32
    %14 = vector.broadcast %cst_11 : f32 to vector<1x256xf32>
    %15 = arith.mulf %13, %14 : vector<1x256xf32>
    %c1_12 = arith.constant 1 : index
    %c0_13 = arith.constant 0 : index
    %16 = vector.load %arg6[%c1_12, %c0_13] : memref<2x256xf32, #tpu.memory_space<vmem>>, vector<1x256xf32>
    tpu.vector_store %arg6[%c1_12, %c0_13], %15 {strides = array<i32>} : memref<2x256xf32, #tpu.memory_space<vmem>>, vector<1x256xf32>,
    %cst_14 = arith.constant dense<0xFF800000> : vector<256xf32>
    %17 = vector.multi_reduction <maximumf>, %11, %cst_14 [0] : vector<4x256xf32> to vector<256xf32>
    %18 = vector.shape_cast %17 : vector<256xf32> to vector<1x256xf32>
    %c1_15 = arith.constant 1 : index
    %c0_16 = arith.constant 0 : index
    %19 = vector.load %arg7[%c1_15, %c0_16] : memref<2x256xf32, #tpu.memory_space<vmem>>, vector<1x256xf32>
    tpu.vector_store %arg7[%c1_15, %c0_16], %18 {strides = array<i32>} : memref<2x256xf32, #tpu.memory_space<vmem>>, vector<1x256xf32>,
    %c0_17 = arith.constant 0 : index
    %c0_18 = arith.constant 0 : index
    %20 = vector.load %arg6[%c0_17, %c0_18] : memref<2x256xf32, #tpu.memory_space<vmem>>, vector<2x256xf32>
    %c0_19 = arith.constant 0 : index
    %c0_20 = arith.constant 0 : index
    %21 = vector.load %arg7[%c0_19, %c0_20] : memref<2x256xf32, #tpu.memory_space<vmem>>, vector<2x256xf32>
    %22 = tpu.iota {dimensions = array<i32: 1>} : vector<2x256xi32>
    %c15_i32 = arith.constant 15 : i32
    %23 = vector.broadcast %c15_i32 : i32 to vector<2x256xi32>
    %24 = arith.andi %22, %23 : vector<2x256xi32>
    %c3_i32 = arith.constant 3 : i32
    %25 = vector.broadcast %c3_i32 : i32 to vector<2x256xi32>
    %26 = arith.cmpi sge, %24, %25 : vector<2x256xi32>
    %c2_i32 = arith.constant 2 : i32
    %27 = vector.broadcast %c2_i32 : i32 to vector<2x256xi32>
    %28 = arith.cmpi sge, %24, %27 : vector<2x256xi32>
    %c1_i32 = arith.constant 1 : i32
    %29 = vector.broadcast %c1_i32 : i32 to vector<2x256xi32>
    %30 = arith.cmpi sge, %24, %29 : vector<2x256xi32>
    %c15_i32_21 = arith.constant 15 : i32
    %31 = vector.broadcast %c15_i32_21 : i32 to vector<2x256xi32>
    %32 = arith.cmpi slt, %24, %31 : vector<2x256xi32>
    %c14_i32 = arith.constant 14 : i32
    %33 = vector.broadcast %c14_i32 : i32 to vector<2x256xi32>
    %34 = arith.cmpi slt, %24, %33 : vector<2x256xi32>
    %c13_i32 = arith.constant 13 : i32
    %35 = vector.broadcast %c13_i32 : i32 to vector<2x256xi32>
    %36 = arith.cmpi slt, %24, %35 : vector<2x256xi32>
    %c0_22 = arith.constant 0 : index
    %37 = memref.load %arg2[%c0_22] : memref<1xf32, #tpu.memory_space<smem>>
    %38 = vector.broadcast %37 : f32 to vector<2x256xf32>
    %cst_23 = arith.constant 0.000000e+00 : f32
    %39 = vector.broadcast %cst_23 : f32 to vector<2x256xf32>
    %cst_24 = arith.constant 0.000000e+00 : f32
    %40 = vector.broadcast %cst_24 : f32 to vector<2x256xf32>
    %cst_25 = arith.constant 0.000000e+00 : f32
    %41 = vector.broadcast %cst_25 : f32 to vector<2x256xf32>
    %c48_i32 = arith.constant 48 : i32
    %42 = vector.broadcast %c48_i32 : i32 to vector<2x256xi32>
    %43 = arith.cmpi sge, %22, %42 : vector<2x256xi32>
    %c0_26 = arith.constant 0 : index
    %44 = memref.load %arg1[%c0_26] : memref<98xf32, #tpu.memory_space<smem>>
    %c49 = arith.constant 49 : index
    %45 = memref.load %arg1[%c49] : memref<98xf32, #tpu.memory_space<smem>>
    %46 = arith.andi %43, %26 : vector<2x256xi1>
    %47 = vector.broadcast %44 : f32 to vector<2x256xf32>
    %48 = arith.mulf %47, %20 : vector<2x256xf32>
    %49 = vector.broadcast %45 : f32 to vector<2x256xf32>
    %50 = arith.mulf %49, %21 : vector<2x256xf32>
    %51 = arith.addf %48, %50 : vector<2x256xf32>
    %c51_i32 = arith.constant 51 : i32
    %52 = tpu.dynamic_rotate %51 by %c51_i32 dim 1 : vector<2x256xf32>, i32 -> vector<2x256xf32>
    %cst_27 = arith.constant 0.000000e+00 : f32
    %53 = vector.broadcast %cst_27 : f32 to vector<2x256xf32>
    %54 = arith.select %46, %52, %53 : vector<2x256xi1>, vector<2x256xf32>
    %55 = arith.addf %38, %54 : vector<2x256xf32>
    %c1_28 = arith.constant 1 : index
    %56 = memref.load %arg1[%c1_28] : memref<98xf32, #tpu.memory_space<smem>>
    %c50 = arith.constant 50 : index
    %57 = memref.load %arg1[%c50] : memref<98xf32, #tpu.memory_space<smem>>
    %58 = arith.andi %43, %28 : vector<2x256xi1>
    %59 = vector.broadcast %56 : f32 to vector<2x256xf32>
    %60 = arith.mulf %59, %20 : vector<2x256xf32>
    %61 = vector.broadcast %57 : f32 to vector<2x256xf32>
    %62 = arith.mulf %61, %21 : vector<2x256xf32>
    %63 = arith.addf %60, %62 : vector<2x256xf32>
    %c50_i32 = arith.constant 50 : i32
    %64 = tpu.dynamic_rotate %63 by %c50_i32 dim 1 : vector<2x256xf32>, i32 -> vector<2x256xf32>
    %cst_29 = arith.constant 0.000000e+00 : f32
    %65 = vector.broadcast %cst_29 : f32 to vector<2x256xf32>
    %66 = arith.select %58, %64, %65 : vector<2x256xi1>, vector<2x256xf32>
    %67 = arith.addf %39, %66 : vector<2x256xf32>
    %c2 = arith.constant 2 : index
    %68 = memref.load %arg1[%c2] : memref<98xf32, #tpu.memory_space<smem>>
    %c51 = arith.constant 51 : index
    %69 = memref.load %arg1[%c51] : memref<98xf32, #tpu.memory_space<smem>>
    %70 = arith.andi %43, %30 : vector<2x256xi1>
    %71 = vector.broadcast %68 : f32 to vector<2x256xf32>
    %72 = arith.mulf %71, %20 : vector<2x256xf32>
    %73 = vector.broadcast %69 : f32 to vector<2x256xf32>
    %74 = arith.mulf %73, %21 : vector<2x256xf32>
    %75 = arith.addf %72, %74 : vector<2x256xf32>
    %c49_i32 = arith.constant 49 : i32
    %76 = tpu.dynamic_rotate %75 by %c49_i32 dim 1 : vector<2x256xf32>, i32 -> vector<2x256xf32>
    %cst_30 = arith.constant 0.000000e+00 : f32
    %77 = vector.broadcast %cst_30 : f32 to vector<2x256xf32>
    %78 = arith.select %70, %76, %77 : vector<2x256xi1>, vector<2x256xf32>
    %79 = arith.addf %40, %78 : vector<2x256xf32>
    %c3 = arith.constant 3 : index
    %80 = memref.load %arg1[%c3] : memref<98xf32, #tpu.memory_space<smem>>
    %c52 = arith.constant 52 : index
    %81 = memref.load %arg1[%c52] : memref<98xf32, #tpu.memory_space<smem>>
    %82 = vector.broadcast %80 : f32 to vector<2x256xf32>
    %83 = arith.mulf %82, %20 : vector<2x256xf32>
    %84 = vector.broadcast %81 : f32 to vector<2x256xf32>
    %85 = arith.mulf %84, %21 : vector<2x256xf32>
    %86 = arith.addf %83, %85 : vector<2x256xf32>
    %c48_i32_31 = arith.constant 48 : i32
    %87 = tpu.dynamic_rotate %86 by %c48_i32_31 dim 1 : vector<2x256xf32>, i32 -> vector<2x256xf32>
    %cst_32 = arith.constant 0.000000e+00 : f32
    %88 = vector.broadcast %cst_32 : f32 to vector<2x256xf32>
    %89 = arith.select %43, %87, %88 : vector<2x256xi1>, vector<2x256xf32>
    %90 = arith.addf %41, %89 : vector<2x256xf32>
    %c4 = arith.constant 4 : index
    %91 = memref.load %arg1[%c4] : memref<98xf32, #tpu.memory_space<smem>>
    %c53 = arith.constant 53 : index
    %92 = memref.load %arg1[%c53] : memref<98xf32, #tpu.memory_space<smem>>
    %93 = arith.andi %43, %32 : vector<2x256xi1>
    %94 = vector.broadcast %91 : f32 to vector<2x256xf32>
    %95 = arith.mulf %94, %20 : vector<2x256xf32>
    %96 = vector.broadcast %92 : f32 to vector<2x256xf32>
    %97 = arith.mulf %96, %21 : vector<2x256xf32>
    %98 = arith.addf %95, %97 : vector<2x256xf32>
    %c47_i32 = arith.constant 47 : i32
    %99 = tpu.dynamic_rotate %98 by %c47_i32 dim 1 : vector<2x256xf32>, i32 -> vector<2x256xf32>
    %cst_33 = arith.constant 0.000000e+00 : f32
    %100 = vector.broadcast %cst_33 : f32 to vector<2x256xf32>
    %101 = arith.select %93, %99, %100 : vector<2x256xi1>, vector<2x256xf32>
    %102 = arith.addf %55, %101 : vector<2x256xf32>
    %c5 = arith.constant 5 : index
    %103 = memref.load %arg1[%c5] : memref<98xf32, #tpu.memory_space<smem>>
    %c54 = arith.constant 54 : index
    %104 = memref.load %arg1[%c54] : memref<98xf32, #tpu.memory_space<smem>>
    %105 = arith.andi %43, %34 : vector<2x256xi1>
    %106 = vector.broadcast %103 : f32 to vector<2x256xf32>
    %107 = arith.mulf %106, %20 : vector<2x256xf32>
    %108 = vector.broadcast %104 : f32 to vector<2x256xf32>
    %109 = arith.mulf %108, %21 : vector<2x256xf32>
    %110 = arith.addf %107, %109 : vector<2x256xf32>
    %c46_i32 = arith.constant 46 : i32
    %111 = tpu.dynamic_rotate %110 by %c46_i32 dim 1 : vector<2x256xf32>, i32 -> vector<2x256xf32>
    %cst_34 = arith.constant 0.000000e+00 : f32
    %112 = vector.broadcast %cst_34 : f32 to vector<2x256xf32>
    %113 = arith.select %105, %111, %112 : vector<2x256xi1>, vector<2x256xf32>
    %114 = arith.addf %67, %113 : vector<2x256xf32>
    %c6 = arith.constant 6 : index
    %115 = memref.load %arg1[%c6] : memref<98xf32, #tpu.memory_space<smem>>
    %c55 = arith.constant 55 : index
    %116 = memref.load %arg1[%c55] : memref<98xf32, #tpu.memory_space<smem>>
    %117 = arith.andi %43, %36 : vector<2x256xi1>
    %118 = vector.broadcast %115 : f32 to vector<2x256xf32>
    %119 = arith.mulf %118, %20 : vector<2x256xf32>
    %120 = vector.broadcast %116 : f32 to vector<2x256xf32>
    %121 = arith.mulf %120, %21 : vector<2x256xf32>
    %122 = arith.addf %119, %121 : vector<2x256xf32>
    %c45_i32 = arith.constant 45 : i32
    %123 = tpu.dynamic_rotate %122 by %c45_i32 dim 1 : vector<2x256xf32>, i32 -> vector<2x256xf32>
    %cst_35 = arith.constant 0.000000e+00 : f32
    %124 = vector.broadcast %cst_35 : f32 to vector<2x256xf32>
    %125 = arith.select %117, %123, %124 : vector<2x256xi1>, vector<2x256xf32>
    %126 = arith.addf %79, %125 : vector<2x256xf32>
    %c32_i32 = arith.constant 32 : i32
    %127 = vector.broadcast %c32_i32 : i32 to vector<2x256xi32>
    %128 = arith.cmpi sge, %22, %127 : vector<2x256xi32>
    %c7 = arith.constant 7 : index
    %129 = memref.load %arg1[%c7] : memref<98xf32, #tpu.memory_space<smem>>
    %c56 = arith.constant 56 : index
    %130 = memref.load %arg1[%c56] : memref<98xf32, #tpu.memory_space<smem>>
    %131 = arith.andi %128, %26 : vector<2x256xi1>
    %132 = vector.broadcast %129 : f32 to vector<2x256xf32>
    %133 = arith.mulf %132, %20 : vector<2x256xf32>
    %134 = vector.broadcast %130 : f32 to vector<2x256xf32>
    %135 = arith.mulf %134, %21 : vector<2x256xf32>
    %136 = arith.addf %133, %135 : vector<2x256xf32>
    %c35_i32 = arith.constant 35 : i32
    %137 = tpu.dynamic_rotate %136 by %c35_i32 dim 1 : vector<2x256xf32>, i32 -> vector<2x256xf32>
    %cst_36 = arith.constant 0.000000e+00 : f32
    %138 = vector.broadcast %cst_36 : f32 to vector<2x256xf32>
    %139 = arith.select %131, %137, %138 : vector<2x256xi1>, vector<2x256xf32>
    %140 = arith.addf %90, %139 : vector<2x256xf32>
    %c8 = arith.constant 8 : index
    %141 = memref.load %arg1[%c8] : memref<98xf32, #tpu.memory_space<smem>>
    %c57 = arith.constant 57 : index
    %142 = memref.load %arg1[%c57] : memref<98xf32, #tpu.memory_space<smem>>
    %143 = arith.andi %128, %28 : vector<2x256xi1>
    %144 = vector.broadcast %141 : f32 to vector<2x256xf32>
    %145 = arith.mulf %144, %20 : vector<2x256xf32>
    %146 = vector.broadcast %142 : f32 to vector<2x256xf32>
    %147 = arith.mulf %146, %21 : vector<2x256xf32>
    %148 = arith.addf %145, %147 : vector<2x256xf32>
    %c34_i32 = arith.constant 34 : i32
    %149 = tpu.dynamic_rotate %148 by %c34_i32 dim 1 : vector<2x256xf32>, i32 -> vector<2x256xf32>
    %cst_37 = arith.constant 0.000000e+00 : f32
    %150 = vector.broadcast %cst_37 : f32 to vector<2x256xf32>
    %151 = arith.select %143, %149, %150 : vector<2x256xi1>, vector<2x256xf32>
    %152 = arith.addf %102, %151 : vector<2x256xf32>
    %c9 = arith.constant 9 : index
    %153 = memref.load %arg1[%c9] : memref<98xf32, #tpu.memory_space<smem>>
    %c58 = arith.constant 58 : index
    %154 = memref.load %arg1[%c58] : memref<98xf32, #tpu.memory_space<smem>>
    %155 = arith.andi %128, %30 : vector<2x256xi1>
    %156 = vector.broadcast %153 : f32 to vector<2x256xf32>
    %157 = arith.mulf %156, %20 : vector<2x256xf32>
    %158 = vector.broadcast %154 : f32 to vector<2x256xf32>
    %159 = arith.mulf %158, %21 : vector<2x256xf32>
    %160 = arith.addf %157, %159 : vector<2x256xf32>
    %c33_i32 = arith.constant 33 : i32
    %161 = tpu.dynamic_rotate %160 by %c33_i32 dim 1 : vector<2x256xf32>, i32 -> vector<2x256xf32>
    %cst_38 = arith.constant 0.000000e+00 : f32
    %162 = vector.broadcast %cst_38 : f32 to vector<2x256xf32>
    %163 = arith.select %155, %161, %162 : vector<2x256xi1>, vector<2x256xf32>
    %164 = arith.addf %114, %163 : vector<2x256xf32>
    %c10 = arith.constant 10 : index
    %165 = memref.load %arg1[%c10] : memref<98xf32, #tpu.memory_space<smem>>
    %c59 = arith.constant 59 : index
    %166 = memref.load %arg1[%c59] : memref<98xf32, #tpu.memory_space<smem>>
    %167 = vector.broadcast %165 : f32 to vector<2x256xf32>
    %168 = arith.mulf %167, %20 : vector<2x256xf32>
    %169 = vector.broadcast %166 : f32 to vector<2x256xf32>
    %170 = arith.mulf %169, %21 : vector<2x256xf32>
    %171 = arith.addf %168, %170 : vector<2x256xf32>
    %c32_i32_39 = arith.constant 32 : i32
    %172 = tpu.dynamic_rotate %171 by %c32_i32_39 dim 1 : vector<2x256xf32>, i32 -> vector<2x256xf32>
    %cst_40 = arith.constant 0.000000e+00 : f32
    %173 = vector.broadcast %cst_40 : f32 to vector<2x256xf32>
    %174 = arith.select %128, %172, %173 : vector<2x256xi1>, vector<2x256xf32>
    %175 = arith.addf %126, %174 : vector<2x256xf32>
    %c11 = arith.constant 11 : index
    %176 = memref.load %arg1[%c11] : memref<98xf32, #tpu.memory_space<smem>>
    %c60 = arith.constant 60 : index
    %177 = memref.load %arg1[%c60] : memref<98xf32, #tpu.memory_space<smem>>
    %178 = arith.andi %128, %32 : vector<2x256xi1>
    %179 = vector.broadcast %176 : f32 to vector<2x256xf32>
    %180 = arith.mulf %179, %20 : vector<2x256xf32>
    %181 = vector.broadcast %177 : f32 to vector<2x256xf32>
    %182 = arith.mulf %181, %21 : vector<2x256xf32>
    %183 = arith.addf %180, %182 : vector<2x256xf32>
    %c31_i32 = arith.constant 31 : i32
    %184 = tpu.dynamic_rotate %183 by %c31_i32 dim 1 : vector<2x256xf32>, i32 -> vector<2x256xf32>
    %cst_41 = arith.constant 0.000000e+00 : f32
    %185 = vector.broadcast %cst_41 : f32 to vector<2x256xf32>
    %186 = arith.select %178, %184, %185 : vector<2x256xi1>, vector<2x256xf32>
    %187 = arith.addf %140, %186 : vector<2x256xf32>
    %c12 = arith.constant 12 : index
    %188 = memref.load %arg1[%c12] : memref<98xf32, #tpu.memory_space<smem>>
    %c61 = arith.constant 61 : index
    %189 = memref.load %arg1[%c61] : memref<98xf32, #tpu.memory_space<smem>>
    %190 = arith.andi %128, %34 : vector<2x256xi1>
    %191 = vector.broadcast %188 : f32 to vector<2x256xf32>
    %192 = arith.mulf %191, %20 : vector<2x256xf32>
    %193 = vector.broadcast %189 : f32 to vector<2x256xf32>
    %194 = arith.mulf %193, %21 : vector<2x256xf32>
    %195 = arith.addf %192, %194 : vector<2x256xf32>
    %c30_i32 = arith.constant 30 : i32
    %196 = tpu.dynamic_rotate %195 by %c30_i32 dim 1 : vector<2x256xf32>, i32 -> vector<2x256xf32>
    %cst_42 = arith.constant 0.000000e+00 : f32
    %197 = vector.broadcast %cst_42 : f32 to vector<2x256xf32>
    %198 = arith.select %190, %196, %197 : vector<2x256xi1>, vector<2x256xf32>
    %199 = arith.addf %152, %198 : vector<2x256xf32>
    %c13 = arith.constant 13 : index
    %200 = memref.load %arg1[%c13] : memref<98xf32, #tpu.memory_space<smem>>
    %c62 = arith.constant 62 : index
    %201 = memref.load %arg1[%c62] : memref<98xf32, #tpu.memory_space<smem>>
    %202 = arith.andi %128, %36 : vector<2x256xi1>
    %203 = vector.broadcast %200 : f32 to vector<2x256xf32>
    %204 = arith.mulf %203, %20 : vector<2x256xf32>
    %205 = vector.broadcast %201 : f32 to vector<2x256xf32>
    %206 = arith.mulf %205, %21 : vector<2x256xf32>
    %207 = arith.addf %204, %206 : vector<2x256xf32>
    %c29_i32 = arith.constant 29 : i32
    %208 = tpu.dynamic_rotate %207 by %c29_i32 dim 1 : vector<2x256xf32>, i32 -> vector<2x256xf32>
    %cst_43 = arith.constant 0.000000e+00 : f32
    %209 = vector.broadcast %cst_43 : f32 to vector<2x256xf32>
    %210 = arith.select %202, %208, %209 : vector<2x256xi1>, vector<2x256xf32>
    %211 = arith.addf %164, %210 : vector<2x256xf32>
    %c16_i32 = arith.constant 16 : i32
    %212 = vector.broadcast %c16_i32 : i32 to vector<2x256xi32>
    %213 = arith.cmpi sge, %22, %212 : vector<2x256xi32>
    %c14 = arith.constant 14 : index
    %214 = memref.load %arg1[%c14] : memref<98xf32, #tpu.memory_space<smem>>
    %c63 = arith.constant 63 : index
    %215 = memref.load %arg1[%c63] : memref<98xf32, #tpu.memory_space<smem>>
    %216 = arith.andi %213, %26 : vector<2x256xi1>
    %217 = vector.broadcast %214 : f32 to vector<2x256xf32>
    %218 = arith.mulf %217, %20 : vector<2x256xf32>
    %219 = vector.broadcast %215 : f32 to vector<2x256xf32>
    %220 = arith.mulf %219, %21 : vector<2x256xf32>
    %221 = arith.addf %218, %220 : vector<2x256xf32>
    %c19_i32 = arith.constant 19 : i32
    %222 = tpu.dynamic_rotate %221 by %c19_i32 dim 1 : vector<2x256xf32>, i32 -> vector<2x256xf32>
    %cst_44 = arith.constant 0.000000e+00 : f32
    %223 = vector.broadcast %cst_44 : f32 to vector<2x256xf32>
    %224 = arith.select %216, %222, %223 : vector<2x256xi1>, vector<2x256xf32>
    %225 = arith.addf %175, %224 : vector<2x256xf32>
    %c15 = arith.constant 15 : index
    %226 = memref.load %arg1[%c15] : memref<98xf32, #tpu.memory_space<smem>>
    %c64 = arith.constant 64 : index
    %227 = memref.load %arg1[%c64] : memref<98xf32, #tpu.memory_space<smem>>
    %228 = arith.andi %213, %28 : vector<2x256xi1>
    %229 = vector.broadcast %226 : f32 to vector<2x256xf32>
    %230 = arith.mulf %229, %20 : vector<2x256xf32>
    %231 = vector.broadcast %227 : f32 to vector<2x256xf32>
    %232 = arith.mulf %231, %21 : vector<2x256xf32>
    %233 = arith.addf %230, %232 : vector<2x256xf32>
    %c18_i32 = arith.constant 18 : i32
    %234 = tpu.dynamic_rotate %233 by %c18_i32 dim 1 : vector<2x256xf32>, i32 -> vector<2x256xf32>
    %cst_45 = arith.constant 0.000000e+00 : f32
    %235 = vector.broadcast %cst_45 : f32 to vector<2x256xf32>
    %236 = arith.select %228, %234, %235 : vector<2x256xi1>, vector<2x256xf32>
    %237 = arith.addf %187, %236 : vector<2x256xf32>
    %c16 = arith.constant 16 : index
    %238 = memref.load %arg1[%c16] : memref<98xf32, #tpu.memory_space<smem>>
    %c65 = arith.constant 65 : index
    %239 = memref.load %arg1[%c65] : memref<98xf32, #tpu.memory_space<smem>>
    %240 = arith.andi %213, %30 : vector<2x256xi1>
    %241 = vector.broadcast %238 : f32 to vector<2x256xf32>
    %242 = arith.mulf %241, %20 : vector<2x256xf32>
    %243 = vector.broadcast %239 : f32 to vector<2x256xf32>
    %244 = arith.mulf %243, %21 : vector<2x256xf32>
    %245 = arith.addf %242, %244 : vector<2x256xf32>
    %c17_i32 = arith.constant 17 : i32
    %246 = tpu.dynamic_rotate %245 by %c17_i32 dim 1 : vector<2x256xf32>, i32 -> vector<2x256xf32>
    %cst_46 = arith.constant 0.000000e+00 : f32
    %247 = vector.broadcast %cst_46 : f32 to vector<2x256xf32>
    %248 = arith.select %240, %246, %247 : vector<2x256xi1>, vector<2x256xf32>
    %249 = arith.addf %199, %248 : vector<2x256xf32>
    %c17 = arith.constant 17 : index
    %250 = memref.load %arg1[%c17] : memref<98xf32, #tpu.memory_space<smem>>
    %c66 = arith.constant 66 : index
    %251 = memref.load %arg1[%c66] : memref<98xf32, #tpu.memory_space<smem>>
    %252 = vector.broadcast %250 : f32 to vector<2x256xf32>
    %253 = arith.mulf %252, %20 : vector<2x256xf32>
    %254 = vector.broadcast %251 : f32 to vector<2x256xf32>
    %255 = arith.mulf %254, %21 : vector<2x256xf32>
    %256 = arith.addf %253, %255 : vector<2x256xf32>
    %c16_i32_47 = arith.constant 16 : i32
    %257 = tpu.dynamic_rotate %256 by %c16_i32_47 dim 1 : vector<2x256xf32>, i32 -> vector<2x256xf32>
    %cst_48 = arith.constant 0.000000e+00 : f32
    %258 = vector.broadcast %cst_48 : f32 to vector<2x256xf32>
    %259 = arith.select %213, %257, %258 : vector<2x256xi1>, vector<2x256xf32>
    %260 = arith.addf %211, %259 : vector<2x256xf32>
    %c18 = arith.constant 18 : index
    %261 = memref.load %arg1[%c18] : memref<98xf32, #tpu.memory_space<smem>>
    %c67 = arith.constant 67 : index
    %262 = memref.load %arg1[%c67] : memref<98xf32, #tpu.memory_space<smem>>
    %263 = arith.andi %213, %32 : vector<2x256xi1>
    %264 = vector.broadcast %261 : f32 to vector<2x256xf32>
    %265 = arith.mulf %264, %20 : vector<2x256xf32>
    %266 = vector.broadcast %262 : f32 to vector<2x256xf32>
    %267 = arith.mulf %266, %21 : vector<2x256xf32>
    %268 = arith.addf %265, %267 : vector<2x256xf32>
    %c15_i32_49 = arith.constant 15 : i32
    %269 = tpu.dynamic_rotate %268 by %c15_i32_49 dim 1 : vector<2x256xf32>, i32 -> vector<2x256xf32>
    %cst_50 = arith.constant 0.000000e+00 : f32
    %270 = vector.broadcast %cst_50 : f32 to vector<2x256xf32>
    %271 = arith.select %263, %269, %270 : vector<2x256xi1>, vector<2x256xf32>
    %272 = arith.addf %225, %271 : vector<2x256xf32>
    %c19 = arith.constant 19 : index
    %273 = memref.load %arg1[%c19] : memref<98xf32, #tpu.memory_space<smem>>
    %c68 = arith.constant 68 : index
    %274 = memref.load %arg1[%c68] : memref<98xf32, #tpu.memory_space<smem>>
    %275 = arith.andi %213, %34 : vector<2x256xi1>
    %276 = vector.broadcast %273 : f32 to vector<2x256xf32>
    %277 = arith.mulf %276, %20 : vector<2x256xf32>
    %278 = vector.broadcast %274 : f32 to vector<2x256xf32>
    %279 = arith.mulf %278, %21 : vector<2x256xf32>
    %280 = arith.addf %277, %279 : vector<2x256xf32>
    %c14_i32_51 = arith.constant 14 : i32
    %281 = tpu.dynamic_rotate %280 by %c14_i32_51 dim 1 : vector<2x256xf32>, i32 -> vector<2x256xf32>
    %cst_52 = arith.constant 0.000000e+00 : f32
    %282 = vector.broadcast %cst_52 : f32 to vector<2x256xf32>
    %283 = arith.select %275, %281, %282 : vector<2x256xi1>, vector<2x256xf32>
    %284 = arith.addf %237, %283 : vector<2x256xf32>
    %c20 = arith.constant 20 : index
    %285 = memref.load %arg1[%c20] : memref<98xf32, #tpu.memory_space<smem>>
    %c69 = arith.constant 69 : index
    %286 = memref.load %arg1[%c69] : memref<98xf32, #tpu.memory_space<smem>>
    %287 = arith.andi %213, %36 : vector<2x256xi1>
    %288 = vector.broadcast %285 : f32 to vector<2x256xf32>
    %289 = arith.mulf %288, %20 : vector<2x256xf32>
    %290 = vector.broadcast %286 : f32 to vector<2x256xf32>
    %291 = arith.mulf %290, %21 : vector<2x256xf32>
    %292 = arith.addf %289, %291 : vector<2x256xf32>
    %c13_i32_53 = arith.constant 13 : i32
    %293 = tpu.dynamic_rotate %292 by %c13_i32_53 dim 1 : vector<2x256xf32>, i32 -> vector<2x256xf32>
    %cst_54 = arith.constant 0.000000e+00 : f32
    %294 = vector.broadcast %cst_54 : f32 to vector<2x256xf32>
    %295 = arith.select %287, %293, %294 : vector<2x256xi1>, vector<2x256xf32>
    %296 = arith.addf %249, %295 : vector<2x256xf32>
    %c21 = arith.constant 21 : index
    %297 = memref.load %arg1[%c21] : memref<98xf32, #tpu.memory_space<smem>>
    %c70 = arith.constant 70 : index
    %298 = memref.load %arg1[%c70] : memref<98xf32, #tpu.memory_space<smem>>
    %299 = vector.broadcast %297 : f32 to vector<2x256xf32>
    %300 = arith.mulf %299, %20 : vector<2x256xf32>
    %301 = vector.broadcast %298 : f32 to vector<2x256xf32>
    %302 = arith.mulf %301, %21 : vector<2x256xf32>
    %303 = arith.addf %300, %302 : vector<2x256xf32>
    %c3_i32_55 = arith.constant 3 : i32
    %304 = tpu.dynamic_rotate %303 by %c3_i32_55 dim 1 : vector<2x256xf32>, i32 -> vector<2x256xf32>
    %cst_56 = arith.constant 0.000000e+00 : f32
    %305 = vector.broadcast %cst_56 : f32 to vector<2x256xf32>
    %306 = arith.select %26, %304, %305 : vector<2x256xi1>, vector<2x256xf32>
    %307 = arith.addf %260, %306 : vector<2x256xf32>
    %c22 = arith.constant 22 : index
    %308 = memref.load %arg1[%c22] : memref<98xf32, #tpu.memory_space<smem>>
    %c71 = arith.constant 71 : index
    %309 = memref.load %arg1[%c71] : memref<98xf32, #tpu.memory_space<smem>>
    %310 = vector.broadcast %308 : f32 to vector<2x256xf32>
    %311 = arith.mulf %310, %20 : vector<2x256xf32>
    %312 = vector.broadcast %309 : f32 to vector<2x256xf32>
    %313 = arith.mulf %312, %21 : vector<2x256xf32>
    %314 = arith.addf %311, %313 : vector<2x256xf32>
    %c2_i32_57 = arith.constant 2 : i32
    %315 = tpu.dynamic_rotate %314 by %c2_i32_57 dim 1 : vector<2x256xf32>, i32 -> vector<2x256xf32>
    %cst_58 = arith.constant 0.000000e+00 : f32
    %316 = vector.broadcast %cst_58 : f32 to vector<2x256xf32>
    %317 = arith.select %28, %315, %316 : vector<2x256xi1>, vector<2x256xf32>
    %318 = arith.addf %272, %317 : vector<2x256xf32>
    %c23 = arith.constant 23 : index
    %319 = memref.load %arg1[%c23] : memref<98xf32, #tpu.memory_space<smem>>
    %c72 = arith.constant 72 : index
    %320 = memref.load %arg1[%c72] : memref<98xf32, #tpu.memory_space<smem>>
    %321 = vector.broadcast %319 : f32 to vector<2x256xf32>
    %322 = arith.mulf %321, %20 : vector<2x256xf32>
    %323 = vector.broadcast %320 : f32 to vector<2x256xf32>
    %324 = arith.mulf %323, %21 : vector<2x256xf32>
    %325 = arith.addf %322, %324 : vector<2x256xf32>
    %c1_i32_59 = arith.constant 1 : i32
    %326 = tpu.dynamic_rotate %325 by %c1_i32_59 dim 1 : vector<2x256xf32>, i32 -> vector<2x256xf32>
    %cst_60 = arith.constant 0.000000e+00 : f32
    %327 = vector.broadcast %cst_60 : f32 to vector<2x256xf32>
    %328 = arith.select %30, %326, %327 : vector<2x256xi1>, vector<2x256xf32>
    %329 = arith.addf %284, %328 : vector<2x256xf32>
    %c24 = arith.constant 24 : index
    %330 = memref.load %arg1[%c24] : memref<98xf32, #tpu.memory_space<smem>>
    %c73 = arith.constant 73 : index
    %331 = memref.load %arg1[%c73] : memref<98xf32, #tpu.memory_space<smem>>
    %332 = vector.broadcast %330 : f32 to vector<2x256xf32>
    %333 = arith.mulf %332, %20 : vector<2x256xf32>
    %334 = vector.broadcast %331 : f32 to vector<2x256xf32>
    %335 = arith.mulf %334, %21 : vector<2x256xf32>
    %336 = arith.addf %333, %335 : vector<2x256xf32>
    %337 = arith.addf %296, %336 : vector<2x256xf32>
    %c25 = arith.constant 25 : index
    %338 = memref.load %arg1[%c25] : memref<98xf32, #tpu.memory_space<smem>>
    %c74 = arith.constant 74 : index
    %339 = memref.load %arg1[%c74] : memref<98xf32, #tpu.memory_space<smem>>
    %340 = vector.broadcast %338 : f32 to vector<2x256xf32>
    %341 = arith.mulf %340, %20 : vector<2x256xf32>
    %342 = vector.broadcast %339 : f32 to vector<2x256xf32>
    %343 = arith.mulf %342, %21 : vector<2x256xf32>
    %344 = arith.addf %341, %343 : vector<2x256xf32>
    %c255_i32 = arith.constant 255 : i32
    %345 = tpu.dynamic_rotate %344 by %c255_i32 dim 1 : vector<2x256xf32>, i32 -> vector<2x256xf32>
    %cst_61 = arith.constant 0.000000e+00 : f32
    %346 = vector.broadcast %cst_61 : f32 to vector<2x256xf32>
    %347 = arith.select %32, %345, %346 : vector<2x256xi1>, vector<2x256xf32>
    %348 = arith.addf %307, %347 : vector<2x256xf32>
    %c26 = arith.constant 26 : index
    %349 = memref.load %arg1[%c26] : memref<98xf32, #tpu.memory_space<smem>>
    %c75 = arith.constant 75 : index
    %350 = memref.load %arg1[%c75] : memref<98xf32, #tpu.memory_space<smem>>
    %351 = vector.broadcast %349 : f32 to vector<2x256xf32>
    %352 = arith.mulf %351, %20 : vector<2x256xf32>
    %353 = vector.broadcast %350 : f32 to vector<2x256xf32>
    %354 = arith.mulf %353, %21 : vector<2x256xf32>
    %355 = arith.addf %352, %354 : vector<2x256xf32>
    %c254_i32 = arith.constant 254 : i32
    %356 = tpu.dynamic_rotate %355 by %c254_i32 dim 1 : vector<2x256xf32>, i32 -> vector<2x256xf32>
    %cst_62 = arith.constant 0.000000e+00 : f32
    %357 = vector.broadcast %cst_62 : f32 to vector<2x256xf32>
    %358 = arith.select %34, %356, %357 : vector<2x256xi1>, vector<2x256xf32>
    %359 = arith.addf %318, %358 : vector<2x256xf32>
    %c27 = arith.constant 27 : index
    %360 = memref.load %arg1[%c27] : memref<98xf32, #tpu.memory_space<smem>>
    %c76 = arith.constant 76 : index
    %361 = memref.load %arg1[%c76] : memref<98xf32, #tpu.memory_space<smem>>
    %362 = vector.broadcast %360 : f32 to vector<2x256xf32>
    %363 = arith.mulf %362, %20 : vector<2x256xf32>
    %364 = vector.broadcast %361 : f32 to vector<2x256xf32>
    %365 = arith.mulf %364, %21 : vector<2x256xf32>
    %366 = arith.addf %363, %365 : vector<2x256xf32>
    %c253_i32 = arith.constant 253 : i32
    %367 = tpu.dynamic_rotate %366 by %c253_i32 dim 1 : vector<2x256xf32>, i32 -> vector<2x256xf32>
    %cst_63 = arith.constant 0.000000e+00 : f32
    %368 = vector.broadcast %cst_63 : f32 to vector<2x256xf32>
    %369 = arith.select %36, %367, %368 : vector<2x256xi1>, vector<2x256xf32>
    %370 = arith.addf %329, %369 : vector<2x256xf32>
    %c240_i32 = arith.constant 240 : i32
    %371 = vector.broadcast %c240_i32 : i32 to vector<2x256xi32>
    %372 = arith.cmpi slt, %22, %371 : vector<2x256xi32>
    %c28 = arith.constant 28 : index
    %373 = memref.load %arg1[%c28] : memref<98xf32, #tpu.memory_space<smem>>
    %c77 = arith.constant 77 : index
    %374 = memref.load %arg1[%c77] : memref<98xf32, #tpu.memory_space<smem>>
    %375 = arith.andi %372, %26 : vector<2x256xi1>
    %376 = vector.broadcast %373 : f32 to vector<2x256xf32>
    %377 = arith.mulf %376, %20 : vector<2x256xf32>
    %378 = vector.broadcast %374 : f32 to vector<2x256xf32>
    %379 = arith.mulf %378, %21 : vector<2x256xf32>
    %380 = arith.addf %377, %379 : vector<2x256xf32>
    %c243_i32 = arith.constant 243 : i32
    %381 = tpu.dynamic_rotate %380 by %c243_i32 dim 1 : vector<2x256xf32>, i32 -> vector<2x256xf32>
    %cst_64 = arith.constant 0.000000e+00 : f32
    %382 = vector.broadcast %cst_64 : f32 to vector<2x256xf32>
    %383 = arith.select %375, %381, %382 : vector<2x256xi1>, vector<2x256xf32>
    %384 = arith.addf %337, %383 : vector<2x256xf32>
    %c29 = arith.constant 29 : index
    %385 = memref.load %arg1[%c29] : memref<98xf32, #tpu.memory_space<smem>>
    %c78 = arith.constant 78 : index
    %386 = memref.load %arg1[%c78] : memref<98xf32, #tpu.memory_space<smem>>
    %387 = arith.andi %372, %28 : vector<2x256xi1>
    %388 = vector.broadcast %385 : f32 to vector<2x256xf32>
    %389 = arith.mulf %388, %20 : vector<2x256xf32>
    %390 = vector.broadcast %386 : f32 to vector<2x256xf32>
    %391 = arith.mulf %390, %21 : vector<2x256xf32>
    %392 = arith.addf %389, %391 : vector<2x256xf32>
    %c242_i32 = arith.constant 242 : i32
    %393 = tpu.dynamic_rotate %392 by %c242_i32 dim 1 : vector<2x256xf32>, i32 -> vector<2x256xf32>
    %cst_65 = arith.constant 0.000000e+00 : f32
    %394 = vector.broadcast %cst_65 : f32 to vector<2x256xf32>
    %395 = arith.select %387, %393, %394 : vector<2x256xi1>, vector<2x256xf32>
    %396 = arith.addf %348, %395 : vector<2x256xf32>
    %c30 = arith.constant 30 : index
    %397 = memref.load %arg1[%c30] : memref<98xf32, #tpu.memory_space<smem>>
    %c79 = arith.constant 79 : index
    %398 = memref.load %arg1[%c79] : memref<98xf32, #tpu.memory_space<smem>>
    %399 = arith.andi %372, %30 : vector<2x256xi1>
    %400 = vector.broadcast %397 : f32 to vector<2x256xf32>
    %401 = arith.mulf %400, %20 : vector<2x256xf32>
    %402 = vector.broadcast %398 : f32 to vector<2x256xf32>
    %403 = arith.mulf %402, %21 : vector<2x256xf32>
    %404 = arith.addf %401, %403 : vector<2x256xf32>
    %c241_i32 = arith.constant 241 : i32
    %405 = tpu.dynamic_rotate %404 by %c241_i32 dim 1 : vector<2x256xf32>, i32 -> vector<2x256xf32>
    %cst_66 = arith.constant 0.000000e+00 : f32
    %406 = vector.broadcast %cst_66 : f32 to vector<2x256xf32>
    %407 = arith.select %399, %405, %406 : vector<2x256xi1>, vector<2x256xf32>
    %408 = arith.addf %359, %407 : vector<2x256xf32>
    %c31 = arith.constant 31 : index
    %409 = memref.load %arg1[%c31] : memref<98xf32, #tpu.memory_space<smem>>
    %c80 = arith.constant 80 : index
    %410 = memref.load %arg1[%c80] : memref<98xf32, #tpu.memory_space<smem>>
    %411 = vector.broadcast %409 : f32 to vector<2x256xf32>
    %412 = arith.mulf %411, %20 : vector<2x256xf32>
    %413 = vector.broadcast %410 : f32 to vector<2x256xf32>
    %414 = arith.mulf %413, %21 : vector<2x256xf32>
    %415 = arith.addf %412, %414 : vector<2x256xf32>
    %c240_i32_67 = arith.constant 240 : i32
    %416 = tpu.dynamic_rotate %415 by %c240_i32_67 dim 1 : vector<2x256xf32>, i32 -> vector<2x256xf32>
    %cst_68 = arith.constant 0.000000e+00 : f32
    %417 = vector.broadcast %cst_68 : f32 to vector<2x256xf32>
    %418 = arith.select %372, %416, %417 : vector<2x256xi1>, vector<2x256xf32>
    %419 = arith.addf %370, %418 : vector<2x256xf32>
    %c32 = arith.constant 32 : index
    %420 = memref.load %arg1[%c32] : memref<98xf32, #tpu.memory_space<smem>>
    %c81 = arith.constant 81 : index
    %421 = memref.load %arg1[%c81] : memref<98xf32, #tpu.memory_space<smem>>
    %422 = arith.andi %372, %32 : vector<2x256xi1>
    %423 = vector.broadcast %420 : f32 to vector<2x256xf32>
    %424 = arith.mulf %423, %20 : vector<2x256xf32>
    %425 = vector.broadcast %421 : f32 to vector<2x256xf32>
    %426 = arith.mulf %425, %21 : vector<2x256xf32>
    %427 = arith.addf %424, %426 : vector<2x256xf32>
    %c239_i32 = arith.constant 239 : i32
    %428 = tpu.dynamic_rotate %427 by %c239_i32 dim 1 : vector<2x256xf32>, i32 -> vector<2x256xf32>
    %cst_69 = arith.constant 0.000000e+00 : f32
    %429 = vector.broadcast %cst_69 : f32 to vector<2x256xf32>
    %430 = arith.select %422, %428, %429 : vector<2x256xi1>, vector<2x256xf32>
    %431 = arith.addf %384, %430 : vector<2x256xf32>
    %c33 = arith.constant 33 : index
    %432 = memref.load %arg1[%c33] : memref<98xf32, #tpu.memory_space<smem>>
    %c82 = arith.constant 82 : index
    %433 = memref.load %arg1[%c82] : memref<98xf32, #tpu.memory_space<smem>>
    %434 = arith.andi %372, %34 : vector<2x256xi1>
    %435 = vector.broadcast %432 : f32 to vector<2x256xf32>
    %436 = arith.mulf %435, %20 : vector<2x256xf32>
    %437 = vector.broadcast %433 : f32 to vector<2x256xf32>
    %438 = arith.mulf %437, %21 : vector<2x256xf32>
    %439 = arith.addf %436, %438 : vector<2x256xf32>
    %c238_i32 = arith.constant 238 : i32
    %440 = tpu.dynamic_rotate %439 by %c238_i32 dim 1 : vector<2x256xf32>, i32 -> vector<2x256xf32>
    %cst_70 = arith.constant 0.000000e+00 : f32
    %441 = vector.broadcast %cst_70 : f32 to vector<2x256xf32>
    %442 = arith.select %434, %440, %441 : vector<2x256xi1>, vector<2x256xf32>
    %443 = arith.addf %396, %442 : vector<2x256xf32>
    %c34 = arith.constant 34 : index
    %444 = memref.load %arg1[%c34] : memref<98xf32, #tpu.memory_space<smem>>
    %c83 = arith.constant 83 : index
    %445 = memref.load %arg1[%c83] : memref<98xf32, #tpu.memory_space<smem>>
    %446 = arith.andi %372, %36 : vector<2x256xi1>
    %447 = vector.broadcast %444 : f32 to vector<2x256xf32>
    %448 = arith.mulf %447, %20 : vector<2x256xf32>
    %449 = vector.broadcast %445 : f32 to vector<2x256xf32>
    %450 = arith.mulf %449, %21 : vector<2x256xf32>
    %451 = arith.addf %448, %450 : vector<2x256xf32>
    %c237_i32 = arith.constant 237 : i32
    %452 = tpu.dynamic_rotate %451 by %c237_i32 dim 1 : vector<2x256xf32>, i32 -> vector<2x256xf32>
    %cst_71 = arith.constant 0.000000e+00 : f32
    %453 = vector.broadcast %cst_71 : f32 to vector<2x256xf32>
    %454 = arith.select %446, %452, %453 : vector<2x256xi1>, vector<2x256xf32>
    %455 = arith.addf %408, %454 : vector<2x256xf32>
    %c224_i32 = arith.constant 224 : i32
    %456 = vector.broadcast %c224_i32 : i32 to vector<2x256xi32>
    %457 = arith.cmpi slt, %22, %456 : vector<2x256xi32>
    %c35 = arith.constant 35 : index
    %458 = memref.load %arg1[%c35] : memref<98xf32, #tpu.memory_space<smem>>
    %c84 = arith.constant 84 : index
    %459 = memref.load %arg1[%c84] : memref<98xf32, #tpu.memory_space<smem>>
    %460 = arith.andi %457, %26 : vector<2x256xi1>
    %461 = vector.broadcast %458 : f32 to vector<2x256xf32>
    %462 = arith.mulf %461, %20 : vector<2x256xf32>
    %463 = vector.broadcast %459 : f32 to vector<2x256xf32>
    %464 = arith.mulf %463, %21 : vector<2x256xf32>
    %465 = arith.addf %462, %464 : vector<2x256xf32>
    %c227_i32 = arith.constant 227 : i32
    %466 = tpu.dynamic_rotate %465 by %c227_i32 dim 1 : vector<2x256xf32>, i32 -> vector<2x256xf32>
    %cst_72 = arith.constant 0.000000e+00 : f32
    %467 = vector.broadcast %cst_72 : f32 to vector<2x256xf32>
    %468 = arith.select %460, %466, %467 : vector<2x256xi1>, vector<2x256xf32>
    %469 = arith.addf %419, %468 : vector<2x256xf32>
    %c36 = arith.constant 36 : index
    %470 = memref.load %arg1[%c36] : memref<98xf32, #tpu.memory_space<smem>>
    %c85 = arith.constant 85 : index
    %471 = memref.load %arg1[%c85] : memref<98xf32, #tpu.memory_space<smem>>
    %472 = arith.andi %457, %28 : vector<2x256xi1>
    %473 = vector.broadcast %470 : f32 to vector<2x256xf32>
    %474 = arith.mulf %473, %20 : vector<2x256xf32>
    %475 = vector.broadcast %471 : f32 to vector<2x256xf32>
    %476 = arith.mulf %475, %21 : vector<2x256xf32>
    %477 = arith.addf %474, %476 : vector<2x256xf32>
    %c226_i32 = arith.constant 226 : i32
    %478 = tpu.dynamic_rotate %477 by %c226_i32 dim 1 : vector<2x256xf32>, i32 -> vector<2x256xf32>
    %cst_73 = arith.constant 0.000000e+00 : f32
    %479 = vector.broadcast %cst_73 : f32 to vector<2x256xf32>
    %480 = arith.select %472, %478, %479 : vector<2x256xi1>, vector<2x256xf32>
    %481 = arith.addf %431, %480 : vector<2x256xf32>
    %c37 = arith.constant 37 : index
    %482 = memref.load %arg1[%c37] : memref<98xf32, #tpu.memory_space<smem>>
    %c86 = arith.constant 86 : index
    %483 = memref.load %arg1[%c86] : memref<98xf32, #tpu.memory_space<smem>>
    %484 = arith.andi %457, %30 : vector<2x256xi1>
    %485 = vector.broadcast %482 : f32 to vector<2x256xf32>
    %486 = arith.mulf %485, %20 : vector<2x256xf32>
    %487 = vector.broadcast %483 : f32 to vector<2x256xf32>
    %488 = arith.mulf %487, %21 : vector<2x256xf32>
    %489 = arith.addf %486, %488 : vector<2x256xf32>
    %c225_i32 = arith.constant 225 : i32
    %490 = tpu.dynamic_rotate %489 by %c225_i32 dim 1 : vector<2x256xf32>, i32 -> vector<2x256xf32>
    %cst_74 = arith.constant 0.000000e+00 : f32
    %491 = vector.broadcast %cst_74 : f32 to vector<2x256xf32>
    %492 = arith.select %484, %490, %491 : vector<2x256xi1>, vector<2x256xf32>
    %493 = arith.addf %443, %492 : vector<2x256xf32>
    %c38 = arith.constant 38 : index
    %494 = memref.load %arg1[%c38] : memref<98xf32, #tpu.memory_space<smem>>
    %c87 = arith.constant 87 : index
    %495 = memref.load %arg1[%c87] : memref<98xf32, #tpu.memory_space<smem>>
    %496 = vector.broadcast %494 : f32 to vector<2x256xf32>
    %497 = arith.mulf %496, %20 : vector<2x256xf32>
    %498 = vector.broadcast %495 : f32 to vector<2x256xf32>
    %499 = arith.mulf %498, %21 : vector<2x256xf32>
    %500 = arith.addf %497, %499 : vector<2x256xf32>
    %c224_i32_75 = arith.constant 224 : i32
    %501 = tpu.dynamic_rotate %500 by %c224_i32_75 dim 1 : vector<2x256xf32>, i32 -> vector<2x256xf32>
    %cst_76 = arith.constant 0.000000e+00 : f32
    %502 = vector.broadcast %cst_76 : f32 to vector<2x256xf32>
    %503 = arith.select %457, %501, %502 : vector<2x256xi1>, vector<2x256xf32>
    %504 = arith.addf %455, %503 : vector<2x256xf32>
    %c39 = arith.constant 39 : index
    %505 = memref.load %arg1[%c39] : memref<98xf32, #tpu.memory_space<smem>>
    %c88 = arith.constant 88 : index
    %506 = memref.load %arg1[%c88] : memref<98xf32, #tpu.memory_space<smem>>
    %507 = arith.andi %457, %32 : vector<2x256xi1>
    %508 = vector.broadcast %505 : f32 to vector<2x256xf32>
    %509 = arith.mulf %508, %20 : vector<2x256xf32>
    %510 = vector.broadcast %506 : f32 to vector<2x256xf32>
    %511 = arith.mulf %510, %21 : vector<2x256xf32>
    %512 = arith.addf %509, %511 : vector<2x256xf32>
    %c223_i32 = arith.constant 223 : i32
    %513 = tpu.dynamic_rotate %512 by %c223_i32 dim 1 : vector<2x256xf32>, i32 -> vector<2x256xf32>
    %cst_77 = arith.constant 0.000000e+00 : f32
    %514 = vector.broadcast %cst_77 : f32 to vector<2x256xf32>
    %515 = arith.select %507, %513, %514 : vector<2x256xi1>, vector<2x256xf32>
    %516 = arith.addf %469, %515 : vector<2x256xf32>
    %c40 = arith.constant 40 : index
    %517 = memref.load %arg1[%c40] : memref<98xf32, #tpu.memory_space<smem>>
    %c89 = arith.constant 89 : index
    %518 = memref.load %arg1[%c89] : memref<98xf32, #tpu.memory_space<smem>>
    %519 = arith.andi %457, %34 : vector<2x256xi1>
    %520 = vector.broadcast %517 : f32 to vector<2x256xf32>
    %521 = arith.mulf %520, %20 : vector<2x256xf32>
    %522 = vector.broadcast %518 : f32 to vector<2x256xf32>
    %523 = arith.mulf %522, %21 : vector<2x256xf32>
    %524 = arith.addf %521, %523 : vector<2x256xf32>
    %c222_i32 = arith.constant 222 : i32
    %525 = tpu.dynamic_rotate %524 by %c222_i32 dim 1 : vector<2x256xf32>, i32 -> vector<2x256xf32>
    %cst_78 = arith.constant 0.000000e+00 : f32
    %526 = vector.broadcast %cst_78 : f32 to vector<2x256xf32>
    %527 = arith.select %519, %525, %526 : vector<2x256xi1>, vector<2x256xf32>
    %528 = arith.addf %481, %527 : vector<2x256xf32>
    %c41 = arith.constant 41 : index
    %529 = memref.load %arg1[%c41] : memref<98xf32, #tpu.memory_space<smem>>
    %c90 = arith.constant 90 : index
    %530 = memref.load %arg1[%c90] : memref<98xf32, #tpu.memory_space<smem>>
    %531 = arith.andi %457, %36 : vector<2x256xi1>
    %532 = vector.broadcast %529 : f32 to vector<2x256xf32>
    %533 = arith.mulf %532, %20 : vector<2x256xf32>
    %534 = vector.broadcast %530 : f32 to vector<2x256xf32>
    %535 = arith.mulf %534, %21 : vector<2x256xf32>
    %536 = arith.addf %533, %535 : vector<2x256xf32>
    %c221_i32 = arith.constant 221 : i32
    %537 = tpu.dynamic_rotate %536 by %c221_i32 dim 1 : vector<2x256xf32>, i32 -> vector<2x256xf32>
    %cst_79 = arith.constant 0.000000e+00 : f32
    %538 = vector.broadcast %cst_79 : f32 to vector<2x256xf32>
    %539 = arith.select %531, %537, %538 : vector<2x256xi1>, vector<2x256xf32>
    %540 = arith.addf %493, %539 : vector<2x256xf32>
    %c208_i32 = arith.constant 208 : i32
    %541 = vector.broadcast %c208_i32 : i32 to vector<2x256xi32>
    %542 = arith.cmpi slt, %22, %541 : vector<2x256xi32>
    %c42 = arith.constant 42 : index
    %543 = memref.load %arg1[%c42] : memref<98xf32, #tpu.memory_space<smem>>
    %c91 = arith.constant 91 : index
    %544 = memref.load %arg1[%c91] : memref<98xf32, #tpu.memory_space<smem>>
    %545 = arith.andi %542, %26 : vector<2x256xi1>
    %546 = vector.broadcast %543 : f32 to vector<2x256xf32>
    %547 = arith.mulf %546, %20 : vector<2x256xf32>
    %548 = vector.broadcast %544 : f32 to vector<2x256xf32>
    %549 = arith.mulf %548, %21 : vector<2x256xf32>
    %550 = arith.addf %547, %549 : vector<2x256xf32>
    %c211_i32 = arith.constant 211 : i32
    %551 = tpu.dynamic_rotate %550 by %c211_i32 dim 1 : vector<2x256xf32>, i32 -> vector<2x256xf32>
    %cst_80 = arith.constant 0.000000e+00 : f32
    %552 = vector.broadcast %cst_80 : f32 to vector<2x256xf32>
    %553 = arith.select %545, %551, %552 : vector<2x256xi1>, vector<2x256xf32>
    %554 = arith.addf %504, %553 : vector<2x256xf32>
    %c43 = arith.constant 43 : index
    %555 = memref.load %arg1[%c43] : memref<98xf32, #tpu.memory_space<smem>>
    %c92 = arith.constant 92 : index
    %556 = memref.load %arg1[%c92] : memref<98xf32, #tpu.memory_space<smem>>
    %557 = arith.andi %542, %28 : vector<2x256xi1>
    %558 = vector.broadcast %555 : f32 to vector<2x256xf32>
    %559 = arith.mulf %558, %20 : vector<2x256xf32>
    %560 = vector.broadcast %556 : f32 to vector<2x256xf32>
    %561 = arith.mulf %560, %21 : vector<2x256xf32>
    %562 = arith.addf %559, %561 : vector<2x256xf32>
    %c210_i32 = arith.constant 210 : i32
    %563 = tpu.dynamic_rotate %562 by %c210_i32 dim 1 : vector<2x256xf32>, i32 -> vector<2x256xf32>
    %cst_81 = arith.constant 0.000000e+00 : f32
    %564 = vector.broadcast %cst_81 : f32 to vector<2x256xf32>
    %565 = arith.select %557, %563, %564 : vector<2x256xi1>, vector<2x256xf32>
    %566 = arith.addf %516, %565 : vector<2x256xf32>
    %c44 = arith.constant 44 : index
    %567 = memref.load %arg1[%c44] : memref<98xf32, #tpu.memory_space<smem>>
    %c93 = arith.constant 93 : index
    %568 = memref.load %arg1[%c93] : memref<98xf32, #tpu.memory_space<smem>>
    %569 = arith.andi %542, %30 : vector<2x256xi1>
    %570 = vector.broadcast %567 : f32 to vector<2x256xf32>
    %571 = arith.mulf %570, %20 : vector<2x256xf32>
    %572 = vector.broadcast %568 : f32 to vector<2x256xf32>
    %573 = arith.mulf %572, %21 : vector<2x256xf32>
    %574 = arith.addf %571, %573 : vector<2x256xf32>
    %c209_i32 = arith.constant 209 : i32
    %575 = tpu.dynamic_rotate %574 by %c209_i32 dim 1 : vector<2x256xf32>, i32 -> vector<2x256xf32>
    %cst_82 = arith.constant 0.000000e+00 : f32
    %576 = vector.broadcast %cst_82 : f32 to vector<2x256xf32>
    %577 = arith.select %569, %575, %576 : vector<2x256xi1>, vector<2x256xf32>
    %578 = arith.addf %528, %577 : vector<2x256xf32>
    %c45 = arith.constant 45 : index
    %579 = memref.load %arg1[%c45] : memref<98xf32, #tpu.memory_space<smem>>
    %c94 = arith.constant 94 : index
    %580 = memref.load %arg1[%c94] : memref<98xf32, #tpu.memory_space<smem>>
    %581 = vector.broadcast %579 : f32 to vector<2x256xf32>
    %582 = arith.mulf %581, %20 : vector<2x256xf32>
    %583 = vector.broadcast %580 : f32 to vector<2x256xf32>
    %584 = arith.mulf %583, %21 : vector<2x256xf32>
    %585 = arith.addf %582, %584 : vector<2x256xf32>
    %c208_i32_83 = arith.constant 208 : i32
    %586 = tpu.dynamic_rotate %585 by %c208_i32_83 dim 1 : vector<2x256xf32>, i32 -> vector<2x256xf32>
    %cst_84 = arith.constant 0.000000e+00 : f32
    %587 = vector.broadcast %cst_84 : f32 to vector<2x256xf32>
    %588 = arith.select %542, %586, %587 : vector<2x256xi1>, vector<2x256xf32>
    %589 = arith.addf %540, %588 : vector<2x256xf32>
    %c46 = arith.constant 46 : index
    %590 = memref.load %arg1[%c46] : memref<98xf32, #tpu.memory_space<smem>>
    %c95 = arith.constant 95 : index
    %591 = memref.load %arg1[%c95] : memref<98xf32, #tpu.memory_space<smem>>
    %592 = arith.andi %542, %32 : vector<2x256xi1>
    %593 = vector.broadcast %590 : f32 to vector<2x256xf32>
    %594 = arith.mulf %593, %20 : vector<2x256xf32>
    %595 = vector.broadcast %591 : f32 to vector<2x256xf32>
    %596 = arith.mulf %595, %21 : vector<2x256xf32>
    %597 = arith.addf %594, %596 : vector<2x256xf32>
    %c207_i32 = arith.constant 207 : i32
    %598 = tpu.dynamic_rotate %597 by %c207_i32 dim 1 : vector<2x256xf32>, i32 -> vector<2x256xf32>
    %cst_85 = arith.constant 0.000000e+00 : f32
    %599 = vector.broadcast %cst_85 : f32 to vector<2x256xf32>
    %600 = arith.select %592, %598, %599 : vector<2x256xi1>, vector<2x256xf32>
    %601 = arith.addf %554, %600 : vector<2x256xf32>
    %c47 = arith.constant 47 : index
    %602 = memref.load %arg1[%c47] : memref<98xf32, #tpu.memory_space<smem>>
    %c96 = arith.constant 96 : index
    %603 = memref.load %arg1[%c96] : memref<98xf32, #tpu.memory_space<smem>>
    %604 = arith.andi %542, %34 : vector<2x256xi1>
    %605 = vector.broadcast %602 : f32 to vector<2x256xf32>
    %606 = arith.mulf %605, %20 : vector<2x256xf32>
    %607 = vector.broadcast %603 : f32 to vector<2x256xf32>
    %608 = arith.mulf %607, %21 : vector<2x256xf32>
    %609 = arith.addf %606, %608 : vector<2x256xf32>
    %c206_i32 = arith.constant 206 : i32
    %610 = tpu.dynamic_rotate %609 by %c206_i32 dim 1 : vector<2x256xf32>, i32 -> vector<2x256xf32>
    %cst_86 = arith.constant 0.000000e+00 : f32
    %611 = vector.broadcast %cst_86 : f32 to vector<2x256xf32>
    %612 = arith.select %604, %610, %611 : vector<2x256xi1>, vector<2x256xf32>
    %613 = arith.addf %566, %612 : vector<2x256xf32>
    %c48 = arith.constant 48 : index
    %614 = memref.load %arg1[%c48] : memref<98xf32, #tpu.memory_space<smem>>
    %c97 = arith.constant 97 : index
    %615 = memref.load %arg1[%c97] : memref<98xf32, #tpu.memory_space<smem>>
    %616 = arith.andi %542, %36 : vector<2x256xi1>
    %617 = vector.broadcast %614 : f32 to vector<2x256xf32>
    %618 = arith.mulf %617, %20 : vector<2x256xf32>
    %619 = vector.broadcast %615 : f32 to vector<2x256xf32>
    %620 = arith.mulf %619, %21 : vector<2x256xf32>
    %621 = arith.addf %618, %620 : vector<2x256xf32>
    %c205_i32 = arith.constant 205 : i32
    %622 = tpu.dynamic_rotate %621 by %c205_i32 dim 1 : vector<2x256xf32>, i32 -> vector<2x256xf32>
    %cst_87 = arith.constant 0.000000e+00 : f32
    %623 = vector.broadcast %cst_87 : f32 to vector<2x256xf32>
    %624 = arith.select %616, %622, %623 : vector<2x256xi1>, vector<2x256xf32>
    %625 = arith.addf %578, %624 : vector<2x256xf32>
    %626 = arith.addf %625, %589 : vector<2x256xf32>
    %627 = arith.addf %601, %613 : vector<2x256xf32>
    %628 = arith.addf %626, %627 : vector<2x256xf32>
    %629 = arith.negf %628 : vector<2x256xf32>
    %630 = math.exp %629 : vector<2x256xf32>
    %cst_88 = arith.constant 1.000000e+00 : f32
    %631 = vector.broadcast %cst_88 : f32 to vector<2x256xf32>
    %632 = arith.addf %631, %630 : vector<2x256xf32>
    %633 = arith.divf %631, %632 : vector<2x256xf32>
    %c0_89 = arith.constant 0 : index
    %c0_90 = arith.constant 0 : index
    %634 = vector.load %arg8[%c0_89, %c0_90] : memref<2x256xf32, #tpu.memory_space<vmem>>, vector<2x256xf32>
    tpu.vector_store %arg8[%c0_89, %c0_90], %633 {strides = array<i32>} : memref<2x256xf32, #tpu.memory_space<vmem>>, vector<2x256xf32>,
    %c0_91 = arith.constant 0 : index
    %c0_92 = arith.constant 0 : index
    %635 = vector.load %arg5[%c0_91, %c0_92] : memref<2x256xf32, #tpu.memory_space<vmem>>, vector<2x256xf32>
    tpu.vector_store %arg5[%c0_91, %c0_92], %633 {strides = array<i32>} : memref<2x256xf32, #tpu.memory_space<vmem>>, vector<2x256xf32>,
    %c0_93 = arith.constant 0 : index
    %c0_94 = arith.constant 0 : index
    %c0_95 = arith.constant 0 : index
    %636 = vector.load %arg3[%c0_93, %c0_94, %c0_95] : memref<2x4x256xf32, #tpu.memory_space<vmem>>, vector<1x4x256xf32>
    %637 = vector.shape_cast %636 : vector<1x4x256xf32> to vector<4x256xf32>
    %c0_96 = arith.constant 0 : index
    %c0_97 = arith.constant 0 : index
    %638 = vector.load %arg8[%c0_96, %c0_97] : memref<2x256xf32, #tpu.memory_space<vmem>>, vector<1x256xf32>
    %639 = vector.broadcast %638 : vector<1x256xf32> to vector<4x256xf32>
    %640 = arith.mulf %637, %639 : vector<4x256xf32>
    %c0_98 = arith.constant 0 : index
    %c0_99 = arith.constant 0 : index
    %c0_100 = arith.constant 0 : index
    %641 = vector.load %arg4[%c0_98, %c0_99, %c0_100] : memref<2x4x256xf32, #tpu.memory_space<vmem>>, vector<1x4x256xf32>
    %642 = vector.shape_cast %641 : vector<1x4x256xf32> to vector<4x256xf32>
    %643 = vector.shape_cast %640 : vector<4x256xf32> to vector<1x4x256xf32>
    tpu.vector_store %arg4[%c0_98, %c0_99, %c0_100], %643 {strides = array<i32>} : memref<2x4x256xf32, #tpu.memory_space<vmem>>, vector<1x4x256xf32>,
    %c1_101 = arith.constant 1 : index
    %c0_102 = arith.constant 0 : index
    %c0_103 = arith.constant 0 : index
    %644 = vector.load %arg3[%c1_101, %c0_102, %c0_103] : memref<2x4x256xf32, #tpu.memory_space<vmem>>, vector<1x4x256xf32>
    %645 = vector.shape_cast %644 : vector<1x4x256xf32> to vector<4x256xf32>
    %c1_104 = arith.constant 1 : index
    %c0_105 = arith.constant 0 : index
    %646 = vector.load %arg8[%c1_104, %c0_105] : memref<2x256xf32, #tpu.memory_space<vmem>>, vector<1x256xf32>
    %647 = vector.broadcast %646 : vector<1x256xf32> to vector<4x256xf32>
    %648 = arith.mulf %645, %647 : vector<4x256xf32>
    %c1_106 = arith.constant 1 : index
    %c0_107 = arith.constant 0 : index
    %c0_108 = arith.constant 0 : index
    %649 = vector.load %arg4[%c1_106, %c0_107, %c0_108] : memref<2x4x256xf32, #tpu.memory_space<vmem>>, vector<1x4x256xf32>
    %650 = vector.shape_cast %649 : vector<1x4x256xf32> to vector<4x256xf32>
    %651 = vector.shape_cast %648 : vector<4x256xf32> to vector<1x4x256xf32>
    tpu.vector_store %arg4[%c1_106, %c0_107, %c0_108], %651 {strides = array<i32>} : memref<2x4x256xf32, #tpu.memory_space<vmem>>, vector<1x4x256xf32>,
    return
  }
  func.func @transform_0(%arg0: i32) -> i32 {
    %c0_i32 = arith.constant 0 : i32
    %c0_i32_0 = arith.constant 0 : i32
    return %c0_i32 : i32
  }
  func.func @transform_1(%arg0: i32) -> i32 {
    %c0_i32 = arith.constant 0 : i32
    %c0_i32_0 = arith.constant 0 : i32
    return %c0_i32 : i32
  }
  func.func @transform_2(%arg0: i32) -> (i32, i32, i32) {
    %c0_i32 = arith.constant 0 : i32
    %c0_i32_0 = arith.constant 0 : i32
    %c0_i32_1 = arith.constant 0 : i32
    return %arg0, %c0_i32, %c0_i32_0 : i32, i32, i32
  }
  func.func @transform_3(%arg0: i32) -> (i32, i32, i32) {
    %c0_i32 = arith.constant 0 : i32
    %c0_i32_0 = arith.constant 0 : i32
    %c0_i32_1 = arith.constant 0 : i32
    return %arg0, %c0_i32, %c0_i32_0 : i32, i32, i32
  }
  func.func @transform_4(%arg0: i32) -> (i32, i32) {
    %c0_i32 = arith.constant 0 : i32
    %c0_i32_0 = arith.constant 0 : i32
    return %arg0, %c0_i32 : i32, i32
  }
}

</mosaic_0001>

<llo_original>
// kernel: spatial_attention.1
$region0: #{spatial_attention.1}
  #allocation0 [shape = 'u32[]', space=smem, size = 0x4, offset = 0x4, fixed_abs, tag = 'smem constant byte address 0x4 - core index']
  #allocation1 [shape = 'u32[144,128]{1,0:T(1,128)}', space=vmem, size = 0x12000, scoped, tag = 'internal scratch']
  #allocation2 [shape = 'f32[2,256]{1,0:T(2,128)}', space=vmem, size = 0x800, scoped, tag = 'scratch operand']
  #allocation3 [shape = 'f32[2,256]{1,0:T(2,128)}', space=vmem, size = 0x800, scoped, tag = 'scratch operand']
  #allocation4 [shape = 'f32[2,256]{1,0:T(2,128)}', space=vmem, size = 0x800, scoped, tag = 'scratch operand']
  #allocation5 [shape = 'f32[1]{0:T(128)S(6)}', space=smem, size = 0x200, scoped, tag = 'scoped memory for spatial_attention.1']
  %s0 = inlined_call_operand.vmem [shape: f32[98], index: 0, kind: input, shape index: {}]
  %s1 = inlined_call_operand.<no memory space> [shape: f32[1], index: 1, kind: input, shape index: {}]
  %s2 = inlined_call_operand.vmem [shape: f32[2,4,256], index: 2, kind: input, shape index: {}]
  %s3 = inlined_call_operand.vmem [shape: f32[2,4,256], index: 3, kind: output, shape index: {0}]
  %s4 = inlined_call_operand.vmem [shape: f32[2,256], index: 4, kind: output, shape index: {1}]
  %5 = xla_tuple %s3, %s4
  %s6 = sld [smem:[#allocation0]]
  $region34: #{spatial_attention.1} parent=0
    _
  %s8 = ssub.s32 1, %s6
  %s9 = scalar_select 0, %s8, %s6
  %10 = sst [smem:[#allocation5]] %s1
  $region1: #{spatial_attention.1} parent=0
    #allocation6 [shape = 'u8[512]{0}', space=smem, size = 0x200, scoped, tag = 'input window, operand 0, single buffered']
    #allocation7 [shape = 's32[1]{0}', space=sflag, size = 0x4, scoped, tag = 'scoped memory for spatial_attention.1']
    %11 = vsyncpa [#allocation7], 0
    // Predicated region
    $region2: #{spatial_attention.1} parent=1 // pred_check
      _
    $region3: #{spatial_attention.1} parent=1 // pred_check_branch
      %13 = sbr.rel (0) target = $region5
    $region4: #{spatial_attention.1} parent=1 // pred_region
      %s15 = ssub.s32 16, 16
      %16 = vsyncadd [#allocation7], %s15
      %s18 = sshll.u32 %s0, 4
      %s19 = int_to_ptr.vmem [resolvable:$true] %s18
      %21 = dma.vmem_to_smem %s19, 16, [#allocation6], [#allocation7]
    $region5: #{spatial_attention.1} parent=1 // pred_fallthru
      _
    // Predicated region
    $region6: #{spatial_attention.1} parent=1 // pred_check
      _
    $region7: #{spatial_attention.1} parent=1 // pred_check_branch
      %23 = sbr.rel (0) target = $region9
    $region8: #{spatial_attention.1} parent=1 // pred_region
      _
    $region9: #{spatial_attention.1} parent=1 // pred_fallthru
      _
    // Predicated region
    $region10: #{spatial_attention.1} parent=1 // pred_check
      _
    $region11: #{spatial_attention.1} parent=1 // pred_check_branch
      %25 = sbr.rel (0) target = $region13
    $region12: #{spatial_attention.1} parent=1 // pred_region
      _
    $region13: #{spatial_attention.1} parent=1 // pred_fallthru
      _
    // Predicated region
    $region14: #{spatial_attention.1} parent=1 // pred_check
      _
    $region15: #{spatial_attention.1} parent=1 // pred_check_branch
      %27 = sbr.rel (0) target = $region17
    $region16: #{spatial_attention.1} parent=1 // pred_region
      %28 = dma.done [#allocation7], 16
    $region17: #{spatial_attention.1} parent=1 // pred_fallthru
      _
    %29 = sfence
    %v30 = vld [vmem:[%s2] sm:$0xff]
    %v32 = vcombine.high %v30, %v30
    %vm34 = vcmask 1043456
    %v35 = vsel %vm34, %v30, 0.0
    %v36 = vrot.slane %v35, 4
    %v37 = vadd.f32 %v35, %v36
    %v38 = vrot.slane %v37, 2
    %v39 = vadd.f32 %v37, %v38
    %v40 = vrot.slane %v39, 1
    %v41 = vadd.f32 %v39, %v40
    %v42 = vsel %vm34, %v32, 0.0
    %v43 = vrot.slane %v42, 4
    %v44 = vadd.f32 %v42, %v43
    %v45 = vrot.slane %v44, 2
    %v46 = vadd.f32 %v44, %v45
    %v47 = vrot.slane %v46, 1
    %v48 = vadd.f32 %v46, %v47
    %v49 = vmul.f32 %v41, 0.25
    %v50 = vmul.f32 %v48, 0.25
    %v53 = vcombine.low %v49, %v50
    %v55 = vunpack.c.l.s4 1966171168
    %v56 = vunpack.c.0.s8 %v55
    %v57 = vlaneseq
    %v58 = vshrl.u32 %v57, 7
    %v59 = vsub.s32 %v56, %v58
    %v60 = vrot.slane %v53, %v59
    %v62 = vunpack.c.l.s4 1966171168
    %v63 = vunpack.c.0.s8 %v62
    %v64 = vlaneseq
    %v65 = vshrl.u32 %v64, 7
    %v66 = vsub.s32 %v63, %v65
    %v67 = vrot.slane %v60, %v66
    %v69 = vlaneseq
    %vm70 = vcmp.ge.s32.totalorder %v69, 0
    %vm71 = vcmp.lt.s32.totalorder %v69, 256
    %vm72 = vmand %vm70, %vm71
    %73 = vst.msk [vmem:[#allocation2] ss:$2 sm:$0x3] %vm72, %v67
    %v74 = vsel %vm34, %v30, -inf
    %v75 = vrot.slane %v74, 4
    %v76 = vmax.f32 %v74, %v75
    %v77 = vrot.slane %v76, 2
    %v78 = vmax.f32 %v76, %v77
    %v79 = vrot.slane %v78, 1
    %v80 = vmax.f32 %v78, %v79
    %v81 = vsel %vm34, %v32, -inf
    %v82 = vrot.slane %v81, 4
    %v83 = vmax.f32 %v81, %v82
    %v84 = vrot.slane %v83, 2
    %v85 = vmax.f32 %v83, %v84
    %v86 = vrot.slane %v85, 1
    %v87 = vmax.f32 %v85, %v86
    %v90 = vcombine.low %v80, %v87
    %v92 = vunpack.c.l.s4 1966171168
    %v93 = vunpack.c.0.s8 %v92
    %v94 = vlaneseq
    %v95 = vshrl.u32 %v94, 7
    %v96 = vsub.s32 %v93, %v95
    %v97 = vrot.slane %v90, %v96
    %v99 = vunpack.c.l.s4 1966171168
    %v100 = vunpack.c.0.s8 %v99
    %v101 = vlaneseq
    %v102 = vshrl.u32 %v101, 7
    %v103 = vsub.s32 %v100, %v102
    %v104 = vrot.slane %v97, %v103
    %106 = vst.msk [vmem:[#allocation3] ss:$2 sm:$0x3] %vm72, %v104
    %s107 = scalar_lea.vmem %s2, 8
    %v108 = vld [vmem:[%s107] sm:$0xff]
    %v110 = vcombine.high %v108, %v108
    %v112 = vsel %vm34, %v108, 0.0
    %v113 = vrot.slane %v112, 4
    %v114 = vadd.f32 %v112, %v113
    %v115 = vrot.slane %v114, 2
    %v116 = vadd.f32 %v114, %v115
    %v117 = vrot.slane %v116, 1
    %v118 = vadd.f32 %v116, %v117
    %v119 = vsel %vm34, %v110, 0.0
    %v120 = vrot.slane %v119, 4
    %v121 = vadd.f32 %v119, %v120
    %v122 = vrot.slane %v121, 2
    %v123 = vadd.f32 %v121, %v122
    %v124 = vrot.slane %v123, 1
    %v125 = vadd.f32 %v123, %v124
    %v126 = vmul.f32 %v118, 0.25
    %v127 = vmul.f32 %v125, 0.25
    %v130 = vcombine.low %v126, %v127
    %v132 = vunpack.c.l.s4 1966171168
    %v133 = vunpack.c.0.s8 %v132
    %v134 = vlaneseq
    %v135 = vshrl.u32 %v134, 7
    %v136 = vsub.s32 %v133, %v135
    %v137 = vrot.slane %v130, %v136
    %v139 = vunpack.c.l.s4 1966171168
    %v140 = vunpack.c.0.s8 %v139
    %v141 = vlaneseq
    %v142 = vshrl.u32 %v141, 7
    %v143 = vsub.s32 %v140, %v142
    %v144 = vrot.slane %v137, %v143
    %s146 = scalar_lea.vmem [#allocation2], 1
    %147 = vst.msk [vmem:[%s146] ss:$2 sm:$0x3] %vm72, %v144
    %v148 = vsel %vm34, %v108, -inf
    %v149 = vrot.slane %v148, 4
    %v150 = vmax.f32 %v148, %v149
    %v151 = vrot.slane %v150, 2
    %v152 = vmax.f32 %v150, %v151
    %v153 = vrot.slane %v152, 1
    %v154 = vmax.f32 %v152, %v153
    %v155 = vsel %vm34, %v110, -inf
    %v156 = vrot.slane %v155, 4
    %v157 = vmax.f32 %v155, %v156
    %v158 = vrot.slane %v157, 2
    %v159 = vmax.f32 %v157, %v158
    %v160 = vrot.slane %v159, 1
    %v161 = vmax.f32 %v159, %v160
    %v164 = vcombine.low %v154, %v161
    %v166 = vunpack.c.l.s4 1966171168
    %v167 = vunpack.c.0.s8 %v166
    %v168 = vlaneseq
    %v169 = vshrl.u32 %v168, 7
    %v170 = vsub.s32 %v167, %v169
    %v171 = vrot.slane %v164, %v170
    %v173 = vunpack.c.l.s4 1966171168
    %v174 = vunpack.c.0.s8 %v173
    %v175 = vlaneseq
    %v176 = vshrl.u32 %v175, 7
    %v177 = vsub.s32 %v174, %v176
    %v178 = vrot.slane %v171, %v177
    %s180 = scalar_lea.vmem [#allocation3], 1
    %181 = vst.msk [vmem:[%s180] ss:$2 sm:$0x3] %vm72, %v178
    %v182 = vld [vmem:[#allocation2] sm:$0xf]
    %v183 = vld [vmem:[#allocation3] sm:$0xf]
    %v184 = vlaneseq
    %v185 = vand.u32 %v184, 127
    %v186 = vadd.s32 %v185, 128
    %v187 = vand.u32 %v185, 15
    %v188 = vand.u32 %v186, 15
    %vm189 = vcmp.ge.s32.totalorder %v187, 3
    %vm190 = vcmp.ge.s32.totalorder %v188, 3
    %vm191 = vcmp.ge.s32.totalorder %v187, 2
    %vm192 = vcmp.ge.s32.totalorder %v188, 2
    %vm193 = vcmp.ge.s32.totalorder %v187, 1
    %vm194 = vcmp.ge.s32.totalorder %v188, 1
    %vm195 = vcmp.lt.s32.totalorder %v187, 15
    %vm196 = vcmp.lt.s32.totalorder %v188, 15
    %vm197 = vcmp.lt.s32.totalorder %v187, 14
    %vm198 = vcmp.lt.s32.totalorder %v188, 14
    %vm199 = vcmp.lt.s32.totalorder %v187, 13
    %vm200 = vcmp.lt.s32.totalorder %v188, 13
    %s201 = sld [smem:[#allocation5]]
    %v202 = vstv %s201
    %vm203 = vcmp.ge.s32.totalorder %v185, 48
    %vm204 = vcmp.ge.s32.totalorder %v186, 48
    %s205 = sld [smem:[#allocation6]]
    %s206 = sld [smem:[#allocation6 + $0x31]]
    %vm207 = vmand %vm203, %vm189
    %vm208 = vmand %vm204, %vm190
    %v209 = vstv %s205
    %v210 = vmul.f32 %v209, %v182
    %v211 = vstv %s206
    %v212 = vmul.f32 %v211, %v183
    %v213 = vadd.f32 %v210, %v212
    %v216 = vunpack.c.l.s4 1983009808
    %v217 = vunpack.c.0.s8 %v216
    %v218 = vlaneseq
    %v219 = vshrl.u32 %v218, 7
    %v220 = vsub.s32 %v217, %v219
    %v221 = vrot.slane %v213, %v220
    %v222 = vcombine.high %v221, %v221
    %225 = vrot.lane.b32.xlu0 %v221, 51
    %v226 = vpop.permute.xlu0 %225
    %227 = vrot.lane.b32.xlu0 %v222, 51
    %v228 = vpop.permute.xlu0 %227
    %vm229 = vcmp.lt.s32.totalorder %v185, 51
    %v230 = vsel %vm229, %v226, %v228
    %v231 = vsel %vm229, %v228, %v226
    %v232 = vsel %vm207, %v231, 0.0
    %v233 = vsel %vm208, %v230, 0.0
    %v234 = vadd.f32 %v202, %v232
    %v235 = vadd.f32 %v202, %v233
    %s236 = sld [smem:[#allocation6 + $0x1]]
    %s237 = sld [smem:[#allocation6 + $0x32]]
    %vm238 = vmand %vm203, %vm191
    %vm239 = vmand %vm204, %vm192
    %v240 = vstv %s236
    %v241 = vmul.f32 %v240, %v182
    %v242 = vstv %s237
    %v243 = vmul.f32 %v242, %v183
    %v244 = vadd.f32 %v241, %v243
    %v247 = vunpack.c.l.s4 1983009808
    %v248 = vunpack.c.0.s8 %v247
    %v249 = vlaneseq
    %v250 = vshrl.u32 %v249, 7
    %v251 = vsub.s32 %v248, %v250
    %v252 = vrot.slane %v244, %v251
    %v253 = vcombine.high %v252, %v252
    %256 = vrot.lane.b32.xlu0 %v252, 50
    %v257 = vpop.permute.xlu0 %256
    %258 = vrot.lane.b32.xlu0 %v253, 50
    %v259 = vpop.permute.xlu0 %258
    %vm260 = vcmp.lt.s32.totalorder %v185, 50
    %v261 = vsel %vm260, %v257, %v259
    %v262 = vsel %vm260, %v259, %v257
    %v263 = vsel %vm238, %v262, 0.0
    %v264 = vsel %vm239, %v261, 0.0
    %v265 = vadd.f32 %v263, 0.0
    %v266 = vadd.f32 %v264, 0.0
    %s267 = sld [smem:[#allocation6 + $0x2]]
    %s268 = sld [smem:[#allocation6 + $0x33]]
    %vm269 = vmand %vm203, %vm193
    %vm270 = vmand %vm204, %vm194
    %v271 = vstv %s267
    %v272 = vmul.f32 %v271, %v182
    %v273 = vstv %s268
    %v274 = vmul.f32 %v273, %v183
    %v275 = vadd.f32 %v272, %v274
    %v278 = vunpack.c.l.s4 1983009808
    %v279 = vunpack.c.0.s8 %v278
    %v280 = vlaneseq
    %v281 = vshrl.u32 %v280, 7
    %v282 = vsub.s32 %v279, %v281
    %v283 = vrot.slane %v275, %v282
    %v284 = vcombine.high %v283, %v283
    %287 = vrot.lane.b32.xlu0 %v283, 49
    %v288 = vpop.permute.xlu0 %287
    %289 = vrot.lane.b32.xlu0 %v284, 49
    %v290 = vpop.permute.xlu0 %289
    %vm291 = vcmp.lt.s32.totalorder %v185, 49
    %v292 = vsel %vm291, %v288, %v290
    %v293 = vsel %vm291, %v290, %v288
    %v294 = vsel %vm269, %v293, 0.0
    %v295 = vsel %vm270, %v292, 0.0
    %v296 = vadd.f32 %v294, 0.0
    %v297 = vadd.f32 %v295, 0.0
    %s298 = sld [smem:[#allocation6 + $0x3]]
    %s299 = sld [smem:[#allocation6 + $0x34]]
    %v300 = vstv %s298
    %v301 = vmul.f32 %v300, %v182
    %v302 = vstv %s299
    %v303 = vmul.f32 %v302, %v183
    %v304 = vadd.f32 %v301, %v303
    %v307 = vunpack.c.l.s4 1983009808
    %v308 = vunpack.c.0.s8 %v307
    %v309 = vlaneseq
    %v310 = vshrl.u32 %v309, 7
    %v311 = vsub.s32 %v308, %v310
    %v312 = vrot.slane %v304, %v311
    %v313 = vcombine.high %v312, %v312
    %316 = vrot.lane.b32.xlu0 %v312, 48
    %v317 = vpop.permute.xlu0 %316
    %318 = vrot.lane.b32.xlu0 %v313, 48
    %v319 = vpop.permute.xlu0 %318
    %vm320 = vcmp.lt.s32.totalorder %v185, 48
    %v321 = vsel %vm320, %v317, %v319
    %v322 = vsel %vm320, %v319, %v317
    %v323 = vsel %vm203, %v322, 0.0
    %v324 = vsel %vm204, %v321, 0.0
    %v325 = vadd.f32 %v323, 0.0
    %v326 = vadd.f32 %v324, 0.0
    %s327 = sld [smem:[#allocation6 + $0x4]]
    %s328 = sld [smem:[#allocation6 + $0x35]]
    %vm329 = vmand %vm203, %vm195
    %vm330 = vmand %vm204, %vm196
    %v331 = vstv %s327
    %v332 = vmul.f32 %v331, %v182
    %v333 = vstv %s328
    %v334 = vmul.f32 %v333, %v183
    %v335 = vadd.f32 %v332, %v334
    %v338 = vunpack.c.l.s4 1983009808
    %v339 = vunpack.c.0.s8 %v338
    %v340 = vlaneseq
    %v341 = vshrl.u32 %v340, 7
    %v342 = vsub.s32 %v339, %v341
    %v343 = vrot.slane %v335, %v342
    %v344 = vcombine.high %v343, %v343
    %347 = vrot.lane.b32.xlu0 %v343, 47
    %v348 = vpop.permute.xlu0 %347
    %349 = vrot.lane.b32.xlu0 %v344, 47
    %v350 = vpop.permute.xlu0 %349
    %vm351 = vcmp.lt.s32.totalorder %v185, 47
    %v352 = vsel %vm351, %v348, %v350
    %v353 = vsel %vm351, %v350, %v348
    %v354 = vsel %vm329, %v353, 0.0
    %v355 = vsel %vm330, %v352, 0.0
    %v356 = vadd.f32 %v234, %v354
    %v357 = vadd.f32 %v235, %v355
    %s358 = sld [smem:[#allocation6 + $0x5]]
    %s359 = sld [smem:[#allocation6 + $0x36]]
    %vm360 = vmand %vm203, %vm197
    %vm361 = vmand %vm204, %vm198
    %v362 = vstv %s358
    %v363 = vmul.f32 %v362, %v182
    %v364 = vstv %s359
    %v365 = vmul.f32 %v364, %v183
    %v366 = vadd.f32 %v363, %v365
    %v369 = vunpack.c.l.s4 1983009808
    %v370 = vunpack.c.0.s8 %v369
    %v371 = vlaneseq
    %v372 = vshrl.u32 %v371, 7
    %v373 = vsub.s32 %v370, %v372
    %v374 = vrot.slane %v366, %v373
    %v375 = vcombine.high %v374, %v374
    %378 = vrot.lane.b32.xlu0 %v374, 46
    %v379 = vpop.permute.xlu0 %378
    %380 = vrot.lane.b32.xlu0 %v375, 46
    %v381 = vpop.permute.xlu0 %380
    %vm382 = vcmp.lt.s32.totalorder %v185, 46
    %v383 = vsel %vm382, %v379, %v381
    %v384 = vsel %vm382, %v381, %v379
    %v385 = vsel %vm360, %v384, 0.0
    %v386 = vsel %vm361, %v383, 0.0
    %v387 = vadd.f32 %v265, %v385
    %v388 = vadd.f32 %v266, %v386
    %s389 = sld [smem:[#allocation6 + $0x6]]
    %s390 = sld [smem:[#allocation6 + $0x37]]
    %vm391 = vmand %vm203, %vm199
    %vm392 = vmand %vm204, %vm200
    %v393 = vstv %s389
    %v394 = vmul.f32 %v393, %v182
    %v395 = vstv %s390
    %v396 = vmul.f32 %v395, %v183
    %v397 = vadd.f32 %v394, %v396
    %v400 = vunpack.c.l.s4 1983009808
    %v401 = vunpack.c.0.s8 %v400
    %v402 = vlaneseq
    %v403 = vshrl.u32 %v402, 7
    %v404 = vsub.s32 %v401, %v403
    %v405 = vrot.slane %v397, %v404
    %v406 = vcombine.high %v405, %v405
    %409 = vrot.lane.b32.xlu0 %v405, 45
    %v410 = vpop.permute.xlu0 %409
    %411 = vrot.lane.b32.xlu0 %v406, 45
    %v412 = vpop.permute.xlu0 %411
    %vm413 = vcmp.lt.s32.totalorder %v185, 45
    %v414 = vsel %vm413, %v410, %v412
    %v415 = vsel %vm413, %v412, %v410
    %v416 = vsel %vm391, %v415, 0.0
    %v417 = vsel %vm392, %v414, 0.0
    %v418 = vadd.f32 %v296, %v416
    %v419 = vadd.f32 %v297, %v417
    %vm420 = vcmp.ge.s32.totalorder %v185, 32
    %vm421 = vcmp.ge.s32.totalorder %v186, 32
    %s422 = sld [smem:[#allocation6 + $0x7]]
    %s423 = sld [smem:[#allocation6 + $0x38]]
    %vm424 = vmand %vm420, %vm189
    %vm425 = vmand %vm421, %vm190
    %v426 = vstv %s422
    %v427 = vmul.f32 %v426, %v182
    %v428 = vstv %s423
    %v429 = vmul.f32 %v428, %v183
    %v430 = vadd.f32 %v427, %v429
    %v433 = vunpack.c.l.s4 1983009808
    %v434 = vunpack.c.0.s8 %v433
    %v435 = vlaneseq
    %v436 = vshrl.u32 %v435, 7
    %v437 = vsub.s32 %v434, %v436
    %v438 = vrot.slane %v430, %v437
    %v439 = vcombine.high %v438, %v438
    %442 = vrot.lane.b32.xlu0 %v438, 35
    %v443 = vpop.permute.xlu0 %442
    %444 = vrot.lane.b32.xlu0 %v439, 35
    %v445 = vpop.permute.xlu0 %444
    %vm446 = vcmp.lt.s32.totalorder %v185, 35
    %v447 = vsel %vm446, %v443, %v445
    %v448 = vsel %vm446, %v445, %v443
    %v449 = vsel %vm424, %v448, 0.0
    %v450 = vsel %vm425, %v447, 0.0
    %v451 = vadd.f32 %v325, %v449
    %v452 = vadd.f32 %v326, %v450
    %s453 = sld [smem:[#allocation6 + $0x8]]
    %s454 = sld [smem:[#allocation6 + $0x39]]
    %vm455 = vmand %vm420, %vm191
    %vm456 = vmand %vm421, %vm192
    %v457 = vstv %s453
    %v458 = vmul.f32 %v457, %v182
    %v459 = vstv %s454
    %v460 = vmul.f32 %v459, %v183
    %v461 = vadd.f32 %v458, %v460
    %v464 = vunpack.c.l.s4 1983009808
    %v465 = vunpack.c.0.s8 %v464
    %v466 = vlaneseq
    %v467 = vshrl.u32 %v466, 7
    %v468 = vsub.s32 %v465, %v467
    %v469 = vrot.slane %v461, %v468
    %v470 = vcombine.high %v469, %v469
    %473 = vrot.lane.b32.xlu0 %v469, 34
    %v474 = vpop.permute.xlu0 %473
    %475 = vrot.lane.b32.xlu0 %v470, 34
    %v476 = vpop.permute.xlu0 %475
    %vm477 = vcmp.lt.s32.totalorder %v185, 34
    %v478 = vsel %vm477, %v474, %v476
    %v479 = vsel %vm477, %v476, %v474
    %v480 = vsel %vm455, %v479, 0.0
    %v481 = vsel %vm456, %v478, 0.0
    %v482 = vadd.f32 %v356, %v480
    %v483 = vadd.f32 %v357, %v481
    %s484 = sld [smem:[#allocation6 + $0x9]]
    %s485 = sld [smem:[#allocation6 + $0x3a]]
    %vm486 = vmand %vm420, %vm193
    %vm487 = vmand %vm421, %vm194
    %v488 = vstv %s484
    %v489 = vmul.f32 %v488, %v182
    %v490 = vstv %s485
    %v491 = vmul.f32 %v490, %v183
    %v492 = vadd.f32 %v489, %v491
    %v495 = vunpack.c.l.s4 1983009808
    %v496 = vunpack.c.0.s8 %v495
    %v497 = vlaneseq
    %v498 = vshrl.u32 %v497, 7
    %v499 = vsub.s32 %v496, %v498
    %v500 = vrot.slane %v492, %v499
    %v501 = vcombine.high %v500, %v500
    %504 = vrot.lane.b32.xlu0 %v500, 33
    %v505 = vpop.permute.xlu0 %504
    %506 = vrot.lane.b32.xlu0 %v501, 33
    %v507 = vpop.permute.xlu0 %506
    %vm508 = vcmp.lt.s32.totalorder %v185, 33
    %v509 = vsel %vm508, %v505, %v507
    %v510 = vsel %vm508, %v507, %v505
    %v511 = vsel %vm486, %v510, 0.0
    %v512 = vsel %vm487, %v509, 0.0
    %v513 = vadd.f32 %v387, %v511
    %v514 = vadd.f32 %v388, %v512
    %s515 = sld [smem:[#allocation6 + $0xa]]
    %s516 = sld [smem:[#allocation6 + $0x3b]]
    %v517 = vstv %s515
    %v518 = vmul.f32 %v517, %v182
    %v519 = vstv %s516
    %v520 = vmul.f32 %v519, %v183
    %v521 = vadd.f32 %v518, %v520
    %v524 = vunpack.c.l.s4 1983009808
    %v525 = vunpack.c.0.s8 %v524
    %v526 = vlaneseq
    %v527 = vshrl.u32 %v526, 7
    %v528 = vsub.s32 %v525, %v527
    %v529 = vrot.slane %v521, %v528
    %v530 = vcombine.high %v529, %v529
    %533 = vrot.lane.b32.xlu0 %v529, 32
    %v534 = vpop.permute.xlu0 %533
    %535 = vrot.lane.b32.xlu0 %v530, 32
    %v536 = vpop.permute.xlu0 %535
    %vm537 = vcmp.lt.s32.totalorder %v185, 32
    %v538 = vsel %vm537, %v534, %v536
    %v539 = vsel %vm537, %v536, %v534
    %v540 = vsel %vm420, %v539, 0.0
    %v541 = vsel %vm421, %v538, 0.0
    %v542 = vadd.f32 %v418, %v540
    %v543 = vadd.f32 %v419, %v541
    %s544 = sld [smem:[#allocation6 + $0xb]]
    %s545 = sld [smem:[#allocation6 + $0x3c]]
    %vm546 = vmand %vm420, %vm195
    %vm547 = vmand %vm421, %vm196
    %v548 = vstv %s544
    %v549 = vmul.f32 %v548, %v182
    %v550 = vstv %s545
    %v551 = vmul.f32 %v550, %v183
    %v552 = vadd.f32 %v549, %v551
    %v555 = vunpack.c.l.s4 1983009808
    %v556 = vunpack.c.0.s8 %v555
    %v557 = vlaneseq
    %v558 = vshrl.u32 %v557, 7
    %v559 = vsub.s32 %v556, %v558
    %v560 = vrot.slane %v552, %v559
    %v561 = vcombine.high %v560, %v560
    %564 = vrot.lane.b32.xlu0 %v560, 31
    %v565 = vpop.permute.xlu0 %564
    %566 = vrot.lane.b32.xlu0 %v561, 31
    %v567 = vpop.permute.xlu0 %566
    %vm568 = vcmp.lt.s32.totalorder %v185, 31
    %v569 = vsel %vm568, %v565, %v567
    %v570 = vsel %vm568, %v567, %v565
    %v571 = vsel %vm546, %v570, 0.0
    %v572 = vsel %vm547, %v569, 0.0
    %v573 = vadd.f32 %v451, %v571
    %v574 = vadd.f32 %v452, %v572
    %s575 = sld [smem:[#allocation6 + $0xc]]
    %s576 = sld [smem:[#allocation6 + $0x3d]]
    %vm577 = vmand %vm420, %vm197
    %vm578 = vmand %vm421, %vm198
    %v579 = vstv %s575
    %v580 = vmul.f32 %v579, %v182
    %v581 = vstv %s576
    %v582 = vmul.f32 %v581, %v183
    %v583 = vadd.f32 %v580, %v582
    %v586 = vunpack.c.l.s4 1983009808
    %v587 = vunpack.c.0.s8 %v586
    %v588 = vlaneseq
    %v589 = vshrl.u32 %v588, 7
    %v590 = vsub.s32 %v587, %v589
    %v591 = vrot.slane %v583, %v590
    %v592 = vcombine.high %v591, %v591
    %595 = vrot.lane.b32.xlu0 %v591, 30
    %v596 = vpop.permute.xlu0 %595
    %597 = vrot.lane.b32.xlu0 %v592, 30
    %v598 = vpop.permute.xlu0 %597
    %vm599 = vcmp.lt.s32.totalorder %v185, 30
    %v600 = vsel %vm599, %v596, %v598
    %v601 = vsel %vm599, %v598, %v596
    %v602 = vsel %vm577, %v601, 0.0
    %v603 = vsel %vm578, %v600, 0.0
    %v604 = vadd.f32 %v482, %v602
    %v605 = vadd.f32 %v483, %v603
    %s606 = sld [smem:[#allocation6 + $0xd]]
    %s607 = sld [smem:[#allocation6 + $0x3e]]
    %vm608 = vmand %vm420, %vm199
    %vm609 = vmand %vm421, %vm200
    %v610 = vstv %s606
    %v611 = vmul.f32 %v610, %v182
    %v612 = vstv %s607
    %v613 = vmul.f32 %v612, %v183
    %v614 = vadd.f32 %v611, %v613
    %v617 = vunpack.c.l.s4 1983009808
    %v618 = vunpack.c.0.s8 %v617
    %v619 = vlaneseq
    %v620 = vshrl.u32 %v619, 7
    %v621 = vsub.s32 %v618, %v620
    %v622 = vrot.slane %v614, %v621
    %v623 = vcombine.high %v622, %v622
    %626 = vrot.lane.b32.xlu0 %v622, 29
    %v627 = vpop.permute.xlu0 %626
    %628 = vrot.lane.b32.xlu0 %v623, 29
    %v629 = vpop.permute.xlu0 %628
    %vm630 = vcmp.lt.s32.totalorder %v185, 29
    %v631 = vsel %vm630, %v627, %v629
    %v632 = vsel %vm630, %v629, %v627
    %v633 = vsel %vm608, %v632, 0.0
    %v634 = vsel %vm609, %v631, 0.0
    %v635 = vadd.f32 %v513, %v633
    %v636 = vadd.f32 %v514, %v634
    %vm637 = vcmp.ge.s32.totalorder %v185, 16
    %vm638 = vcmp.ge.s32.totalorder %v186, 16
    %s639 = sld [smem:[#allocation6 + $0xe]]
    %s640 = sld [smem:[#allocation6 + $0x3f]]
    %vm641 = vmand %vm637, %vm189
    %vm642 = vmand %vm638, %vm190
    %v643 = vstv %s639
    %v644 = vmul.f32 %v643, %v182
    %v645 = vstv %s640
    %v646 = vmul.f32 %v645, %v183
    %v647 = vadd.f32 %v644, %v646
    %v650 = vunpack.c.l.s4 1983009808
    %v651 = vunpack.c.0.s8 %v650
    %v652 = vlaneseq
    %v653 = vshrl.u32 %v652, 7
    %v654 = vsub.s32 %v651, %v653
    %v655 = vrot.slane %v647, %v654
    %v656 = vcombine.high %v655, %v655
    %659 = vrot.lane.b32.xlu0 %v655, 19
    %v660 = vpop.permute.xlu0 %659
    %661 = vrot.lane.b32.xlu0 %v656, 19
    %v662 = vpop.permute.xlu0 %661
    %vm663 = vcmp.lt.s32.totalorder %v185, 19
    %v664 = vsel %vm663, %v660, %v662
    %v665 = vsel %vm663, %v662, %v660
    %v666 = vsel %vm641, %v665, 0.0
    %v667 = vsel %vm642, %v664, 0.0
    %v668 = vadd.f32 %v542, %v666
    %v669 = vadd.f32 %v543, %v667
    %s670 = sld [smem:[#allocation6 + $0xf]]
    %s671 = sld [smem:[#allocation6 + $0x40]]
    %vm672 = vmand %vm637, %vm191
    %vm673 = vmand %vm638, %vm192
    %v674 = vstv %s670
    %v675 = vmul.f32 %v674, %v182
    %v676 = vstv %s671
    %v677 = vmul.f32 %v676, %v183
    %v678 = vadd.f32 %v675, %v677
    %v681 = vunpack.c.l.s4 1983009808
    %v682 = vunpack.c.0.s8 %v681
    %v683 = vlaneseq
    %v684 = vshrl.u32 %v683, 7
    %v685 = vsub.s32 %v682, %v684
    %v686 = vrot.slane %v678, %v685
    %v687 = vcombine.high %v686, %v686
    %690 = vrot.lane.b32.xlu0 %v686, 18
    %v691 = vpop.permute.xlu0 %690
    %692 = vrot.lane.b32.xlu0 %v687, 18
    %v693 = vpop.permute.xlu0 %692
    %vm694 = vcmp.lt.s32.totalorder %v185, 18
    %v695 = vsel %vm694, %v691, %v693
    %v696 = vsel %vm694, %v693, %v691
    %v697 = vsel %vm672, %v696, 0.0
    %v698 = vsel %vm673, %v695, 0.0
    %v699 = vadd.f32 %v573, %v697
    %v700 = vadd.f32 %v574, %v698
    %s701 = sld [smem:[#allocation6 + $0x10]]
    %s702 = sld [smem:[#allocation6 + $0x41]]
    %vm703 = vmand %vm637, %vm193
    %vm704 = vmand %vm638, %vm194
    %v705 = vstv %s701
    %v706 = vmul.f32 %v705, %v182
    %v707 = vstv %s702
    %v708 = vmul.f32 %v707, %v183
    %v709 = vadd.f32 %v706, %v708
    %v712 = vunpack.c.l.s4 1983009808
    %v713 = vunpack.c.0.s8 %v712
    %v714 = vlaneseq
    %v715 = vshrl.u32 %v714, 7
    %v716 = vsub.s32 %v713, %v715
    %v717 = vrot.slane %v709, %v716
    %v718 = vcombine.high %v717, %v717
    %721 = vrot.lane.b32.xlu0 %v717, 17
    %v722 = vpop.permute.xlu0 %721
    %723 = vrot.lane.b32.xlu0 %v718, 17
    %v724 = vpop.permute.xlu0 %723
    %vm725 = vcmp.lt.s32.totalorder %v185, 17
    %v726 = vsel %vm725, %v722, %v724
    %v727 = vsel %vm725, %v724, %v722
    %v728 = vsel %vm703, %v727, 0.0
    %v729 = vsel %vm704, %v726, 0.0
    %v730 = vadd.f32 %v604, %v728
    %v731 = vadd.f32 %v605, %v729
    %s732 = sld [smem:[#allocation6 + $0x11]]
    %s733 = sld [smem:[#allocation6 + $0x42]]
    %v734 = vstv %s732
    %v735 = vmul.f32 %v734, %v182
    %v736 = vstv %s733
    %v737 = vmul.f32 %v736, %v183
    %v738 = vadd.f32 %v735, %v737
    %v741 = vunpack.c.l.s4 1983009808
    %v742 = vunpack.c.0.s8 %v741
    %v743 = vlaneseq
    %v744 = vshrl.u32 %v743, 7
    %v745 = vsub.s32 %v742, %v744
    %v746 = vrot.slane %v738, %v745
    %v747 = vcombine.high %v746, %v746
    %750 = vrot.lane.b32.xlu0 %v746, 16
    %v751 = vpop.permute.xlu0 %750
    %752 = vrot.lane.b32.xlu0 %v747, 16
    %v753 = vpop.permute.xlu0 %752
    %vm754 = vcmp.lt.s32.totalorder %v185, 16
    %v755 = vsel %vm754, %v751, %v753
    %v756 = vsel %vm754, %v753, %v751
    %v757 = vsel %vm637, %v756, 0.0
    %v758 = vsel %vm638, %v755, 0.0
    %v759 = vadd.f32 %v635, %v757
    %v760 = vadd.f32 %v636, %v758
    %s761 = sld [smem:[#allocation6 + $0x12]]
    %s762 = sld [smem:[#allocation6 + $0x43]]
    %vm763 = vmand %vm637, %vm195
    %vm764 = vmand %vm638, %vm196
    %v765 = vstv %s761
    %v766 = vmul.f32 %v765, %v182
    %v767 = vstv %s762
    %v768 = vmul.f32 %v767, %v183
    %v769 = vadd.f32 %v766, %v768
    %v772 = vunpack.c.l.s4 1983009808
    %v773 = vunpack.c.0.s8 %v772
    %v774 = vlaneseq
    %v775 = vshrl.u32 %v774, 7
    %v776 = vsub.s32 %v773, %v775
    %v777 = vrot.slane %v769, %v776
    %v778 = vcombine.high %v777, %v777
    %781 = vrot.lane.b32.xlu0 %v777, 15
    %v782 = vpop.permute.xlu0 %781
    %783 = vrot.lane.b32.xlu0 %v778, 15
    %v784 = vpop.permute.xlu0 %783
    %vm785 = vcmp.lt.s32.totalorder %v185, 15
    %v786 = vsel %vm785, %v782, %v784
    %v787 = vsel %vm785, %v784, %v782
    %v788 = vsel %vm763, %v787, 0.0
    %v789 = vsel %vm764, %v786, 0.0
    %v790 = vadd.f32 %v668, %v788
    %v791 = vadd.f32 %v669, %v789
    %s792 = sld [smem:[#allocation6 + $0x13]]
    %s793 = sld [smem:[#allocation6 + $0x44]]
    %vm794 = vmand %vm637, %vm197
    %vm795 = vmand %vm638, %vm198
    %v796 = vstv %s792
    %v797 = vmul.f32 %v796, %v182
    %v798 = vstv %s793
    %v799 = vmul.f32 %v798, %v183
    %v800 = vadd.f32 %v797, %v799
    %v803 = vunpack.c.l.s4 1983009808
    %v804 = vunpack.c.0.s8 %v803
    %v805 = vlaneseq
    %v806 = vshrl.u32 %v805, 7
    %v807 = vsub.s32 %v804, %v806
    %v808 = vrot.slane %v800, %v807
    %v809 = vcombine.high %v808, %v808
    %812 = vrot.lane.b32.xlu0 %v808, 14
    %v813 = vpop.permute.xlu0 %812
    %814 = vrot.lane.b32.xlu0 %v809, 14
    %v815 = vpop.permute.xlu0 %814
    %vm816 = vcmp.lt.s32.totalorder %v185, 14
    %v817 = vsel %vm816, %v813, %v815
    %v818 = vsel %vm816, %v815, %v813
    %v819 = vsel %vm794, %v818, 0.0
    %v820 = vsel %vm795, %v817, 0.0
    %v821 = vadd.f32 %v699, %v819
    %v822 = vadd.f32 %v700, %v820
    %s823 = sld [smem:[#allocation6 + $0x14]]
    %s824 = sld [smem:[#allocation6 + $0x45]]
    %vm825 = vmand %vm637, %vm199
    %vm826 = vmand %vm638, %vm200
    %v827 = vstv %s823
    %v828 = vmul.f32 %v827, %v182
    %v829 = vstv %s824
    %v830 = vmul.f32 %v829, %v183
    %v831 = vadd.f32 %v828, %v830
    %v834 = vunpack.c.l.s4 1983009808
    %v835 = vunpack.c.0.s8 %v834
    %v836 = vlaneseq
    %v837 = vshrl.u32 %v836, 7
    %v838 = vsub.s32 %v835, %v837
    %v839 = vrot.slane %v831, %v838
    %v840 = vcombine.high %v839, %v839
    %843 = vrot.lane.b32.xlu0 %v839, 13
    %v844 = vpop.permute.xlu0 %843
    %845 = vrot.lane.b32.xlu0 %v840, 13
    %v846 = vpop.permute.xlu0 %845
    %vm847 = vcmp.lt.s32.totalorder %v185, 13
    %v848 = vsel %vm847, %v844, %v846
    %v849 = vsel %vm847, %v846, %v844
    %v850 = vsel %vm825, %v849, 0.0
    %v851 = vsel %vm826, %v848, 0.0
    %v852 = vadd.f32 %v730, %v850
    %v853 = vadd.f32 %v731, %v851
    %s854 = sld [smem:[#allocation6 + $0x15]]
    %s855 = sld [smem:[#allocation6 + $0x46]]
    %v856 = vstv %s854
    %v857 = vmul.f32 %v856, %v182
    %v858 = vstv %s855
    %v859 = vmul.f32 %v858, %v183
    %v860 = vadd.f32 %v857, %v859
    %v863 = vunpack.c.l.s4 1983009808
    %v864 = vunpack.c.0.s8 %v863
    %v865 = vlaneseq
    %v866 = vshrl.u32 %v865, 7
    %v867 = vsub.s32 %v864, %v866
    %v868 = vrot.slane %v860, %v867
    %v869 = vcombine.high %v868, %v868
    %872 = vrot.lane.b32.xlu0 %v868, 3
    %v873 = vpop.permute.xlu0 %872
    %874 = vrot.lane.b32.xlu0 %v869, 3
    %v875 = vpop.permute.xlu0 %874
    %vm876 = vcmp.lt.s32.totalorder %v185, 3
    %v877 = vsel %vm876, %v873, %v875
    %v878 = vsel %vm876, %v875, %v873
    %v879 = vsel %vm189, %v878, 0.0
    %v880 = vsel %vm190, %v877, 0.0
    %v881 = vadd.f32 %v759, %v879
    %v882 = vadd.f32 %v760, %v880
    %s883 = sld [smem:[#allocation6 + $0x16]]
    %s884 = sld [smem:[#allocation6 + $0x47]]
    %v885 = vstv %s883
    %v886 = vmul.f32 %v885, %v182
    %v887 = vstv %s884
    %v888 = vmul.f32 %v887, %v183
    %v889 = vadd.f32 %v886, %v888
    %v892 = vunpack.c.l.s4 1983009808
    %v893 = vunpack.c.0.s8 %v892
    %v894 = vlaneseq
    %v895 = vshrl.u32 %v894, 7
    %v896 = vsub.s32 %v893, %v895
    %v897 = vrot.slane %v889, %v896
    %v898 = vcombine.high %v897, %v897
    %901 = vrot.lane.b32.xlu0 %v897, 2
    %v902 = vpop.permute.xlu0 %901
    %903 = vrot.lane.b32.xlu0 %v898, 2
    %v904 = vpop.permute.xlu0 %903
    %vm905 = vcmp.lt.s32.totalorder %v185, 2
    %v906 = vsel %vm905, %v902, %v904
    %v907 = vsel %vm905, %v904, %v902
    %v908 = vsel %vm191, %v907, 0.0
    %v909 = vsel %vm192, %v906, 0.0
    %v910 = vadd.f32 %v790, %v908
    %v911 = vadd.f32 %v791, %v909
    %s912 = sld [smem:[#allocation6 + $0x17]]
    %s913 = sld [smem:[#allocation6 + $0x48]]
    %v914 = vstv %s912
    %v915 = vmul.f32 %v914, %v182
    %v916 = vstv %s913
    %v917 = vmul.f32 %v916, %v183
    %v918 = vadd.f32 %v915, %v917
    %v921 = vunpack.c.l.s4 1983009808
    %v922 = vunpack.c.0.s8 %v921
    %v923 = vlaneseq
    %v924 = vshrl.u32 %v923, 7
    %v925 = vsub.s32 %v922, %v924
    %v926 = vrot.slane %v918, %v925
    %v927 = vcombine.high %v926, %v926
    %930 = vrot.lane.b32.xlu0 %v926, 1
    %v931 = vpop.permute.xlu0 %930
    %932 = vrot.lane.b32.xlu0 %v927, 1
    %v933 = vpop.permute.xlu0 %932
    %vm934 = vcmp.lt.s32.totalorder %v185, 1
    %v935 = vsel %vm934, %v931, %v933
    %v936 = vsel %vm934, %v933, %v931
    %v937 = vsel %vm193, %v936, 0.0
    %v938 = vsel %vm194, %v935, 0.0
    %v939 = vadd.f32 %v821, %v937
    %v940 = vadd.f32 %v822, %v938
    %s941 = sld [smem:[#allocation6 + $0x18]]
    %s942 = sld [smem:[#allocation6 + $0x49]]
    %v943 = vstv %s941
    %v944 = vmul.f32 %v943, %v182
    %v945 = vstv %s942
    %v946 = vmul.f32 %v945, %v183
    %v947 = vadd.f32 %v944, %v946
    %v950 = vunpack.c.l.s4 1983009808
    %v951 = vunpack.c.0.s8 %v950
    %v952 = vlaneseq
    %v953 = vshrl.u32 %v952, 7
    %v954 = vsub.s32 %v951, %v953
    %v955 = vrot.slane %v947, %v954
    %v956 = vcombine.high %v955, %v955
    %v959 = vadd.f32 %v852, %v955
    %v960 = vadd.f32 %v853, %v956
    %s961 = sld [smem:[#allocation6 + $0x19]]
    %s962 = sld [smem:[#allocation6 + $0x4a]]
    %v963 = vstv %s961
    %v964 = vmul.f32 %v963, %v182
    %v965 = vstv %s962
    %v966 = vmul.f32 %v965, %v183
    %v967 = vadd.f32 %v964, %v966
    %v970 = vunpack.c.l.s4 1983009808
    %v971 = vunpack.c.0.s8 %v970
    %v972 = vlaneseq
    %v973 = vshrl.u32 %v972, 7
    %v974 = vsub.s32 %v971, %v973
    %v975 = vrot.slane %v967, %v974
    %v976 = vcombine.high %v975, %v975
    %979 = vrot.lane.b32.xlu0 %v975, 127
    %v980 = vpop.permute.xlu0 %979
    %981 = vrot.lane.b32.xlu0 %v976, 127
    %v982 = vpop.permute.xlu0 %981
    %vm983 = vcmp.lt.s32.totalorder %v185, 127
    %v984 = vsel %vm983, %v980, %v982
    %v985 = vsel %vm983, %v982, %v980
    %v986 = vsel %vm195, %v984, 0.0
    %v987 = vsel %vm196, %v985, 0.0
    %v988 = vadd.f32 %v881, %v986
    %v989 = vadd.f32 %v882, %v987
    %s990 = sld [smem:[#allocation6 + $0x1a]]
    %s991 = sld [smem:[#allocation6 + $0x4b]]
    %v992 = vstv %s990
    %v993 = vmul.f32 %v992, %v182
    %v994 = vstv %s991
    %v995 = vmul.f32 %v994, %v183
    %v996 = vadd.f32 %v993, %v995
    %v999 = vunpack.c.l.s4 1983009808
    %v1000 = vunpack.c.0.s8 %v999
    %v1001 = vlaneseq
    %v1002 = vshrl.u32 %v1001, 7
    %v1003 = vsub.s32 %v1000, %v1002
    %v1004 = vrot.slane %v996, %v1003
    %v1005 = vcombine.high %v1004, %v1004
    %1008 = vrot.lane.b32.xlu0 %v1004, 126
    %v1009 = vpop.permute.xlu0 %1008
    %1010 = vrot.lane.b32.xlu0 %v1005, 126
    %v1011 = vpop.permute.xlu0 %1010
    %vm1012 = vcmp.lt.s32.totalorder %v185, 126
    %v1013 = vsel %vm1012, %v1009, %v1011
    %v1014 = vsel %vm1012, %v1011, %v1009
    %v1015 = vsel %vm197, %v1013, 0.0
    %v1016 = vsel %vm198, %v1014, 0.0
    %v1017 = vadd.f32 %v910, %v1015
    %v1018 = vadd.f32 %v911, %v1016
    %s1019 = sld [smem:[#allocation6 + $0x1b]]
    %s1020 = sld [smem:[#allocation6 + $0x4c]]
    %v1021 = vstv %s1019
    %v1022 = vmul.f32 %v1021, %v182
    %v1023 = vstv %s1020
    %v1024 = vmul.f32 %v1023, %v183
    %v1025 = vadd.f32 %v1022, %v1024
    %v1028 = vunpack.c.l.s4 1983009808
    %v1029 = vunpack.c.0.s8 %v1028
    %v1030 = vlaneseq
    %v1031 = vshrl.u32 %v1030, 7
    %v1032 = vsub.s32 %v1029, %v1031
    %v1033 = vrot.slane %v1025, %v1032
    %v1034 = vcombine.high %v1033, %v1033
    %1037 = vrot.lane.b32.xlu0 %v1033, 125
    %v1038 = vpop.permute.xlu0 %1037
    %1039 = vrot.lane.b32.xlu0 %v1034, 125
    %v1040 = vpop.permute.xlu0 %1039
    %vm1041 = vcmp.lt.s32.totalorder %v185, 125
    %v1042 = vsel %vm1041, %v1038, %v1040
    %v1043 = vsel %vm1041, %v1040, %v1038
    %v1044 = vsel %vm199, %v1042, 0.0
    %v1045 = vsel %vm200, %v1043, 0.0
    %v1046 = vadd.f32 %v939, %v1044
    %v1047 = vadd.f32 %v940, %v1045
    %vm1048 = vcmp.lt.s32.totalorder %v185, 240
    %vm1049 = vcmp.lt.s32.totalorder %v186, 240
    %s1050 = sld [smem:[#allocation6 + $0x1c]]
    %s1051 = sld [smem:[#allocation6 + $0x4d]]
    %vm1052 = vmand %vm1048, %vm189
    %vm1053 = vmand %vm1049, %vm190
    %v1054 = vstv %s1050
    %v1055 = vmul.f32 %v1054, %v182
    %v1056 = vstv %s1051
    %v1057 = vmul.f32 %v1056, %v183
    %v1058 = vadd.f32 %v1055, %v1057
    %v1061 = vunpack.c.l.s4 1983009808
    %v1062 = vunpack.c.0.s8 %v1061
    %v1063 = vlaneseq
    %v1064 = vshrl.u32 %v1063, 7
    %v1065 = vsub.s32 %v1062, %v1064
    %v1066 = vrot.slane %v1058, %v1065
    %v1067 = vcombine.high %v1066, %v1066
    %1070 = vrot.lane.b32.xlu0 %v1066, 115
    %v1071 = vpop.permute.xlu0 %1070
    %1072 = vrot.lane.b32.xlu0 %v1067, 115
    %v1073 = vpop.permute.xlu0 %1072
    %vm1074 = vcmp.lt.s32.totalorder %v185, 115
    %v1075 = vsel %vm1074, %v1071, %v1073
    %v1076 = vsel %vm1074, %v1073, %v1071
    %v1077 = vsel %vm1052, %v1075, 0.0
    %v1078 = vsel %vm1053, %v1076, 0.0
    %v1079 = vadd.f32 %v959, %v1077
    %v1080 = vadd.f32 %v960, %v1078
    %s1081 = sld [smem:[#allocation6 + $0x1d]]
    %s1082 = sld [smem:[#allocation6 + $0x4e]]
    %vm1083 = vmand %vm1048, %vm191
    %vm1084 = vmand %vm1049, %vm192
    %v1085 = vstv %s1081
    %v1086 = vmul.f32 %v1085, %v182
    %v1087 = vstv %s1082
    %v1088 = vmul.f32 %v1087, %v183
    %v1089 = vadd.f32 %v1086, %v1088
    %v1092 = vunpack.c.l.s4 1983009808
    %v1093 = vunpack.c.0.s8 %v1092
    %v1094 = vlaneseq
    %v1095 = vshrl.u32 %v1094, 7
    %v1096 = vsub.s32 %v1093, %v1095
    %v1097 = vrot.slane %v1089, %v1096
    %v1098 = vcombine.high %v1097, %v1097
    %1101 = vrot.lane.b32.xlu0 %v1097, 114
    %v1102 = vpop.permute.xlu0 %1101
    %1103 = vrot.lane.b32.xlu0 %v1098, 114
    %v1104 = vpop.permute.xlu0 %1103
    %vm1105 = vcmp.lt.s32.totalorder %v185, 114
    %v1106 = vsel %vm1105, %v1102, %v1104
    %v1107 = vsel %vm1105, %v1104, %v1102
    %v1108 = vsel %vm1083, %v1106, 0.0
    %v1109 = vsel %vm1084, %v1107, 0.0
    %v1110 = vadd.f32 %v988, %v1108
    %v1111 = vadd.f32 %v989, %v1109
    %s1112 = sld [smem:[#allocation6 + $0x1e]]
    %s1113 = sld [smem:[#allocation6 + $0x4f]]
    %vm1114 = vmand %vm1048, %vm193
    %vm1115 = vmand %vm1049, %vm194
    %v1116 = vstv %s1112
    %v1117 = vmul.f32 %v1116, %v182
    %v1118 = vstv %s1113
    %v1119 = vmul.f32 %v1118, %v183
    %v1120 = vadd.f32 %v1117, %v1119
    %v1123 = vunpack.c.l.s4 1983009808
    %v1124 = vunpack.c.0.s8 %v1123
    %v1125 = vlaneseq
    %v1126 = vshrl.u32 %v1125, 7
    %v1127 = vsub.s32 %v1124, %v1126
    %v1128 = vrot.slane %v1120, %v1127
    %v1129 = vcombine.high %v1128, %v1128
    %1132 = vrot.lane.b32.xlu0 %v1128, 113
    %v1133 = vpop.permute.xlu0 %1132
    %1134 = vrot.lane.b32.xlu0 %v1129, 113
    %v1135 = vpop.permute.xlu0 %1134
    %vm1136 = vcmp.lt.s32.totalorder %v185, 113
    %v1137 = vsel %vm1136, %v1133, %v1135
    %v1138 = vsel %vm1136, %v1135, %v1133
    %v1139 = vsel %vm1114, %v1137, 0.0
    %v1140 = vsel %vm1115, %v1138, 0.0
    %v1141 = vadd.f32 %v1017, %v1139
    %v1142 = vadd.f32 %v1018, %v1140
    %s1143 = sld [smem:[#allocation6 + $0x1f]]
    %s1144 = sld [smem:[#allocation6 + $0x50]]
    %v1145 = vstv %s1143
    %v1146 = vmul.f32 %v1145, %v182
    %v1147 = vstv %s1144
    %v1148 = vmul.f32 %v1147, %v183
    %v1149 = vadd.f32 %v1146, %v1148
    %v1152 = vunpack.c.l.s4 1983009808
    %v1153 = vunpack.c.0.s8 %v1152
    %v1154 = vlaneseq
    %v1155 = vshrl.u32 %v1154, 7
    %v1156 = vsub.s32 %v1153, %v1155
    %v1157 = vrot.slane %v1149, %v1156
    %v1158 = vcombine.high %v1157, %v1157
    %1161 = vrot.lane.b32.xlu0 %v1157, 112
    %v1162 = vpop.permute.xlu0 %1161
    %1163 = vrot.lane.b32.xlu0 %v1158, 112
    %v1164 = vpop.permute.xlu0 %1163
    %vm1165 = vcmp.lt.s32.totalorder %v185, 112
    %v1166 = vsel %vm1165, %v1162, %v1164
    %v1167 = vsel %vm1165, %v1164, %v1162
    %v1168 = vsel %vm1048, %v1166, 0.0
    %v1169 = vsel %vm1049, %v1167, 0.0
    %v1170 = vadd.f32 %v1046, %v1168
    %v1171 = vadd.f32 %v1047, %v1169
    %s1172 = sld [smem:[#allocation6 + $0x20]]
    %s1173 = sld [smem:[#allocation6 + $0x51]]
    %vm1174 = vmand %vm1048, %vm195
    %vm1175 = vmand %vm1049, %vm196
    %v1176 = vstv %s1172
    %v1177 = vmul.f32 %v1176, %v182
    %v1178 = vstv %s1173
    %v1179 = vmul.f32 %v1178, %v183
    %v1180 = vadd.f32 %v1177, %v1179
    %v1183 = vunpack.c.l.s4 1983009808
    %v1184 = vunpack.c.0.s8 %v1183
    %v1185 = vlaneseq
    %v1186 = vshrl.u32 %v1185, 7
    %v1187 = vsub.s32 %v1184, %v1186
    %v1188 = vrot.slane %v1180, %v1187
    %v1189 = vcombine.high %v1188, %v1188
    %1192 = vrot.lane.b32.xlu0 %v1188, 111
    %v1193 = vpop.permute.xlu0 %1192
    %1194 = vrot.lane.b32.xlu0 %v1189, 111
    %v1195 = vpop.permute.xlu0 %1194
    %vm1196 = vcmp.lt.s32.totalorder %v185, 111
    %v1197 = vsel %vm1196, %v1193, %v1195
    %v1198 = vsel %vm1196, %v1195, %v1193
    %v1199 = vsel %vm1174, %v1197, 0.0
    %v1200 = vsel %vm1175, %v1198, 0.0
    %v1201 = vadd.f32 %v1079, %v1199
    %v1202 = vadd.f32 %v1080, %v1200
    %s1203 = sld [smem:[#allocation6 + $0x21]]
    %s1204 = sld [smem:[#allocation6 + $0x52]]
    %vm1205 = vmand %vm1048, %vm197
    %vm1206 = vmand %vm1049, %vm198
    %v1207 = vstv %s1203
    %v1208 = vmul.f32 %v1207, %v182
    %v1209 = vstv %s1204
    %v1210 = vmul.f32 %v1209, %v183
    %v1211 = vadd.f32 %v1208, %v1210
    %v1214 = vunpack.c.l.s4 1983009808
    %v1215 = vunpack.c.0.s8 %v1214
    %v1216 = vlaneseq
    %v1217 = vshrl.u32 %v1216, 7
    %v1218 = vsub.s32 %v1215, %v1217
    %v1219 = vrot.slane %v1211, %v1218
    %v1220 = vcombine.high %v1219, %v1219
    %1223 = vrot.lane.b32.xlu0 %v1219, 110
    %v1224 = vpop.permute.xlu0 %1223
    %1225 = vrot.lane.b32.xlu0 %v1220, 110
    %v1226 = vpop.permute.xlu0 %1225
    %vm1227 = vcmp.lt.s32.totalorder %v185, 110
    %v1228 = vsel %vm1227, %v1224, %v1226
    %v1229 = vsel %vm1227, %v1226, %v1224
    %v1230 = vsel %vm1205, %v1228, 0.0
    %v1231 = vsel %vm1206, %v1229, 0.0
    %v1232 = vadd.f32 %v1110, %v1230
    %v1233 = vadd.f32 %v1111, %v1231
    %s1234 = sld [smem:[#allocation6 + $0x22]]
    %s1235 = sld [smem:[#allocation6 + $0x53]]
    %vm1236 = vmand %vm1048, %vm199
    %vm1237 = vmand %vm1049, %vm200
    %v1238 = vstv %s1234
    %v1239 = vmul.f32 %v1238, %v182
    %v1240 = vstv %s1235
    %v1241 = vmul.f32 %v1240, %v183
    %v1242 = vadd.f32 %v1239, %v1241
    %v1245 = vunpack.c.l.s4 1983009808
    %v1246 = vunpack.c.0.s8 %v1245
    %v1247 = vlaneseq
    %v1248 = vshrl.u32 %v1247, 7
    %v1249 = vsub.s32 %v1246, %v1248
    %v1250 = vrot.slane %v1242, %v1249
    %v1251 = vcombine.high %v1250, %v1250
    %1254 = vrot.lane.b32.xlu0 %v1250, 109
    %v1255 = vpop.permute.xlu0 %1254
    %1256 = vrot.lane.b32.xlu0 %v1251, 109
    %v1257 = vpop.permute.xlu0 %1256
    %vm1258 = vcmp.lt.s32.totalorder %v185, 109
    %v1259 = vsel %vm1258, %v1255, %v1257
    %v1260 = vsel %vm1258, %v1257, %v1255
    %v1261 = vsel %vm1236, %v1259, 0.0
    %v1262 = vsel %vm1237, %v1260, 0.0
    %v1263 = vadd.f32 %v1141, %v1261
    %v1264 = vadd.f32 %v1142, %v1262
    %vm1265 = vcmp.lt.s32.totalorder %v185, 224
    %vm1266 = vcmp.lt.s32.totalorder %v186, 224
    %s1267 = sld [smem:[#allocation6 + $0x23]]
    %s1268 = sld [smem:[#allocation6 + $0x54]]
    %vm1269 = vmand %vm1265, %vm189
    %vm1270 = vmand %vm1266, %vm190
    %v1271 = vstv %s1267
    %v1272 = vmul.f32 %v1271, %v182
    %v1273 = vstv %s1268
    %v1274 = vmul.f32 %v1273, %v183
    %v1275 = vadd.f32 %v1272, %v1274
    %v1278 = vunpack.c.l.s4 1983009808
    %v1279 = vunpack.c.0.s8 %v1278
    %v1280 = vlaneseq
    %v1281 = vshrl.u32 %v1280, 7
    %v1282 = vsub.s32 %v1279, %v1281
    %v1283 = vrot.slane %v1275, %v1282
    %v1284 = vcombine.high %v1283, %v1283
    %1287 = vrot.lane.b32.xlu0 %v1283, 99
    %v1288 = vpop.permute.xlu0 %1287
    %1289 = vrot.lane.b32.xlu0 %v1284, 99
    %v1290 = vpop.permute.xlu0 %1289
    %vm1291 = vcmp.lt.s32.totalorder %v185, 99
    %v1292 = vsel %vm1291, %v1288, %v1290
    %v1293 = vsel %vm1291, %v1290, %v1288
    %v1294 = vsel %vm1269, %v1292, 0.0
    %v1295 = vsel %vm1270, %v1293, 0.0
    %v1296 = vadd.f32 %v1170, %v1294
    %v1297 = vadd.f32 %v1171, %v1295
    %s1298 = sld [smem:[#allocation6 + $0x24]]
    %s1299 = sld [smem:[#allocation6 + $0x55]]
    %vm1300 = vmand %vm1265, %vm191
    %vm1301 = vmand %vm1266, %vm192
    %v1302 = vstv %s1298
    %v1303 = vmul.f32 %v1302, %v182
    %v1304 = vstv %s1299
    %v1305 = vmul.f32 %v1304, %v183
    %v1306 = vadd.f32 %v1303, %v1305
    %v1309 = vunpack.c.l.s4 1983009808
    %v1310 = vunpack.c.0.s8 %v1309
    %v1311 = vlaneseq
    %v1312 = vshrl.u32 %v1311, 7
    %v1313 = vsub.s32 %v1310, %v1312
    %v1314 = vrot.slane %v1306, %v1313
    %v1315 = vcombine.high %v1314, %v1314
    %1318 = vrot.lane.b32.xlu0 %v1314, 98
    %v1319 = vpop.permute.xlu0 %1318
    %1320 = vrot.lane.b32.xlu0 %v1315, 98
    %v1321 = vpop.permute.xlu0 %1320
    %vm1322 = vcmp.lt.s32.totalorder %v185, 98
    %v1323 = vsel %vm1322, %v1319, %v1321
    %v1324 = vsel %vm1322, %v1321, %v1319
    %v1325 = vsel %vm1300, %v1323, 0.0
    %v1326 = vsel %vm1301, %v1324, 0.0
    %v1327 = vadd.f32 %v1201, %v1325
    %v1328 = vadd.f32 %v1202, %v1326
    %s1329 = sld [smem:[#allocation6 + $0x25]]
    %s1330 = sld [smem:[#allocation6 + $0x56]]
    %vm1331 = vmand %vm1265, %vm193
    %vm1332 = vmand %vm1266, %vm194
    %v1333 = vstv %s1329
    %v1334 = vmul.f32 %v1333, %v182
    %v1335 = vstv %s1330
    %v1336 = vmul.f32 %v1335, %v183
    %v1337 = vadd.f32 %v1334, %v1336
    %v1340 = vunpack.c.l.s4 1983009808
    %v1341 = vunpack.c.0.s8 %v1340
    %v1342 = vlaneseq
    %v1343 = vshrl.u32 %v1342, 7
    %v1344 = vsub.s32 %v1341, %v1343
    %v1345 = vrot.slane %v1337, %v1344
    %v1346 = vcombine.high %v1345, %v1345
    %1349 = vrot.lane.b32.xlu0 %v1345, 97
    %v1350 = vpop.permute.xlu0 %1349
    %1351 = vrot.lane.b32.xlu0 %v1346, 97
    %v1352 = vpop.permute.xlu0 %1351
    %vm1353 = vcmp.lt.s32.totalorder %v185, 97
    %v1354 = vsel %vm1353, %v1350, %v1352
    %v1355 = vsel %vm1353, %v1352, %v1350
    %v1356 = vsel %vm1331, %v1354, 0.0
    %v1357 = vsel %vm1332, %v1355, 0.0
    %v1358 = vadd.f32 %v1232, %v1356
    %v1359 = vadd.f32 %v1233, %v1357
    %s1360 = sld [smem:[#allocation6 + $0x26]]
    %s1361 = sld [smem:[#allocation6 + $0x57]]
    %v1362 = vstv %s1360
    %v1363 = vmul.f32 %v1362, %v182
    %v1364 = vstv %s1361
    %v1365 = vmul.f32 %v1364, %v183
    %v1366 = vadd.f32 %v1363, %v1365
    %v1369 = vunpack.c.l.s4 1983009808
    %v1370 = vunpack.c.0.s8 %v1369
    %v1371 = vlaneseq
    %v1372 = vshrl.u32 %v1371, 7
    %v1373 = vsub.s32 %v1370, %v1372
    %v1374 = vrot.slane %v1366, %v1373
    %v1375 = vcombine.high %v1374, %v1374
    %1378 = vrot.lane.b32.xlu0 %v1374, 96
    %v1379 = vpop.permute.xlu0 %1378
    %1380 = vrot.lane.b32.xlu0 %v1375, 96
    %v1381 = vpop.permute.xlu0 %1380
    %vm1382 = vcmp.lt.s32.totalorder %v185, 96
    %v1383 = vsel %vm1382, %v1379, %v1381
    %v1384 = vsel %vm1382, %v1381, %v1379
    %v1385 = vsel %vm1265, %v1383, 0.0
    %v1386 = vsel %vm1266, %v1384, 0.0
    %v1387 = vadd.f32 %v1263, %v1385
    %v1388 = vadd.f32 %v1264, %v1386
    %s1389 = sld [smem:[#allocation6 + $0x27]]
    %s1390 = sld [smem:[#allocation6 + $0x58]]
    %vm1391 = vmand %vm1265, %vm195
    %vm1392 = vmand %vm1266, %vm196
    %v1393 = vstv %s1389
    %v1394 = vmul.f32 %v1393, %v182
    %v1395 = vstv %s1390
    %v1396 = vmul.f32 %v1395, %v183
    %v1397 = vadd.f32 %v1394, %v1396
    %v1400 = vunpack.c.l.s4 1983009808
    %v1401 = vunpack.c.0.s8 %v1400
    %v1402 = vlaneseq
    %v1403 = vshrl.u32 %v1402, 7
    %v1404 = vsub.s32 %v1401, %v1403
    %v1405 = vrot.slane %v1397, %v1404
    %v1406 = vcombine.high %v1405, %v1405
    %1409 = vrot.lane.b32.xlu0 %v1405, 95
    %v1410 = vpop.permute.xlu0 %1409
    %1411 = vrot.lane.b32.xlu0 %v1406, 95
    %v1412 = vpop.permute.xlu0 %1411
    %vm1413 = vcmp.lt.s32.totalorder %v185, 95
    %v1414 = vsel %vm1413, %v1410, %v1412
    %v1415 = vsel %vm1413, %v1412, %v1410
    %v1416 = vsel %vm1391, %v1414, 0.0
    %v1417 = vsel %vm1392, %v1415, 0.0
    %v1418 = vadd.f32 %v1296, %v1416
    %v1419 = vadd.f32 %v1297, %v1417
    %s1420 = sld [smem:[#allocation6 + $0x28]]
    %s1421 = sld [smem:[#allocation6 + $0x59]]
    %vm1422 = vmand %vm1265, %vm197
    %vm1423 = vmand %vm1266, %vm198
    %v1424 = vstv %s1420
    %v1425 = vmul.f32 %v1424, %v182
    %v1426 = vstv %s1421
    %v1427 = vmul.f32 %v1426, %v183
    %v1428 = vadd.f32 %v1425, %v1427
    %v1431 = vunpack.c.l.s4 1983009808
    %v1432 = vunpack.c.0.s8 %v1431
    %v1433 = vlaneseq
    %v1434 = vshrl.u32 %v1433, 7
    %v1435 = vsub.s32 %v1432, %v1434
    %v1436 = vrot.slane %v1428, %v1435
    %v1437 = vcombine.high %v1436, %v1436
    %1440 = vrot.lane.b32.xlu0 %v1436, 94
    %v1441 = vpop.permute.xlu0 %1440
    %1442 = vrot.lane.b32.xlu0 %v1437, 94
    %v1443 = vpop.permute.xlu0 %1442
    %vm1444 = vcmp.lt.s32.totalorder %v185, 94
    %v1445 = vsel %vm1444, %v1441, %v1443
    %v1446 = vsel %vm1444, %v1443, %v1441
    %v1447 = vsel %vm1422, %v1445, 0.0
    %v1448 = vsel %vm1423, %v1446, 0.0
    %v1449 = vadd.f32 %v1327, %v1447
    %v1450 = vadd.f32 %v1328, %v1448
    %s1451 = sld [smem:[#allocation6 + $0x29]]
    %s1452 = sld [smem:[#allocation6 + $0x5a]]
    %vm1453 = vmand %vm1265, %vm199
    %vm1454 = vmand %vm1266, %vm200
    %v1455 = vstv %s1451
    %v1456 = vmul.f32 %v1455, %v182
    %v1457 = vstv %s1452
    %v1458 = vmul.f32 %v1457, %v183
    %v1459 = vadd.f32 %v1456, %v1458
    %v1462 = vunpack.c.l.s4 1983009808
    %v1463 = vunpack.c.0.s8 %v1462
    %v1464 = vlaneseq
    %v1465 = vshrl.u32 %v1464, 7
    %v1466 = vsub.s32 %v1463, %v1465
    %v1467 = vrot.slane %v1459, %v1466
    %v1468 = vcombine.high %v1467, %v1467
    %1471 = vrot.lane.b32.xlu0 %v1467, 93
    %v1472 = vpop.permute.xlu0 %1471
    %1473 = vrot.lane.b32.xlu0 %v1468, 93
    %v1474 = vpop.permute.xlu0 %1473
    %vm1475 = vcmp.lt.s32.totalorder %v185, 93
    %v1476 = vsel %vm1475, %v1472, %v1474
    %v1477 = vsel %vm1475, %v1474, %v1472
    %v1478 = vsel %vm1453, %v1476, 0.0
    %v1479 = vsel %vm1454, %v1477, 0.0
    %v1480 = vadd.f32 %v1358, %v1478
    %v1481 = vadd.f32 %v1359, %v1479
    %vm1482 = vcmp.lt.s32.totalorder %v185, 208
    %vm1483 = vcmp.lt.s32.totalorder %v186, 208
    %s1484 = sld [smem:[#allocation6 + $0x2a]]
    %s1485 = sld [smem:[#allocation6 + $0x5b]]
    %vm1486 = vmand %vm1482, %vm189
    %vm1487 = vmand %vm1483, %vm190
    %v1488 = vstv %s1484
    %v1489 = vmul.f32 %v1488, %v182
    %v1490 = vstv %s1485
    %v1491 = vmul.f32 %v1490, %v183
    %v1492 = vadd.f32 %v1489, %v1491
    %v1495 = vunpack.c.l.s4 1983009808
    %v1496 = vunpack.c.0.s8 %v1495
    %v1497 = vlaneseq
    %v1498 = vshrl.u32 %v1497, 7
    %v1499 = vsub.s32 %v1496, %v1498
    %v1500 = vrot.slane %v1492, %v1499
    %v1501 = vcombine.high %v1500, %v1500
    %1504 = vrot.lane.b32.xlu0 %v1500, 83
    %v1505 = vpop.permute.xlu0 %1504
    %1506 = vrot.lane.b32.xlu0 %v1501, 83
    %v1507 = vpop.permute.xlu0 %1506
    %vm1508 = vcmp.lt.s32.totalorder %v185, 83
    %v1509 = vsel %vm1508, %v1505, %v1507
    %v1510 = vsel %vm1508, %v1507, %v1505
    %v1511 = vsel %vm1486, %v1509, 0.0
    %v1512 = vsel %vm1487, %v1510, 0.0
    %v1513 = vadd.f32 %v1387, %v1511
    %v1514 = vadd.f32 %v1388, %v1512
    %s1515 = sld [smem:[#allocation6 + $0x2b]]
    %s1516 = sld [smem:[#allocation6 + $0x5c]]
    %vm1517 = vmand %vm1482, %vm191
    %vm1518 = vmand %vm1483, %vm192
    %v1519 = vstv %s1515
    %v1520 = vmul.f32 %v1519, %v182
    %v1521 = vstv %s1516
    %v1522 = vmul.f32 %v1521, %v183
    %v1523 = vadd.f32 %v1520, %v1522
    %v1526 = vunpack.c.l.s4 1983009808
    %v1527 = vunpack.c.0.s8 %v1526
    %v1528 = vlaneseq
    %v1529 = vshrl.u32 %v1528, 7
    %v1530 = vsub.s32 %v1527, %v1529
    %v1531 = vrot.slane %v1523, %v1530
    %v1532 = vcombine.high %v1531, %v1531
    %1535 = vrot.lane.b32.xlu0 %v1531, 82
    %v1536 = vpop.permute.xlu0 %1535
    %1537 = vrot.lane.b32.xlu0 %v1532, 82
    %v1538 = vpop.permute.xlu0 %1537
    %vm1539 = vcmp.lt.s32.totalorder %v185, 82
    %v1540 = vsel %vm1539, %v1536, %v1538
    %v1541 = vsel %vm1539, %v1538, %v1536
    %v1542 = vsel %vm1517, %v1540, 0.0
    %v1543 = vsel %vm1518, %v1541, 0.0
    %v1544 = vadd.f32 %v1418, %v1542
    %v1545 = vadd.f32 %v1419, %v1543
    %s1546 = sld [smem:[#allocation6 + $0x2c]]
    %s1547 = sld [smem:[#allocation6 + $0x5d]]
    %vm1548 = vmand %vm1482, %vm193
    %vm1549 = vmand %vm1483, %vm194
    %v1550 = vstv %s1546
    %v1551 = vmul.f32 %v1550, %v182
    %v1552 = vstv %s1547
    %v1553 = vmul.f32 %v1552, %v183
    %v1554 = vadd.f32 %v1551, %v1553
    %v1557 = vunpack.c.l.s4 1983009808
    %v1558 = vunpack.c.0.s8 %v1557
    %v1559 = vlaneseq
    %v1560 = vshrl.u32 %v1559, 7
    %v1561 = vsub.s32 %v1558, %v1560
    %v1562 = vrot.slane %v1554, %v1561
    %v1563 = vcombine.high %v1562, %v1562
    %1566 = vrot.lane.b32.xlu0 %v1562, 81
    %v1567 = vpop.permute.xlu0 %1566
    %1568 = vrot.lane.b32.xlu0 %v1563, 81
    %v1569 = vpop.permute.xlu0 %1568
    %vm1570 = vcmp.lt.s32.totalorder %v185, 81
    %v1571 = vsel %vm1570, %v1567, %v1569
    %v1572 = vsel %vm1570, %v1569, %v1567
    %v1573 = vsel %vm1548, %v1571, 0.0
    %v1574 = vsel %vm1549, %v1572, 0.0
    %v1575 = vadd.f32 %v1449, %v1573
    %v1576 = vadd.f32 %v1450, %v1574
    %s1577 = sld [smem:[#allocation6 + $0x2d]]
    %s1578 = sld [smem:[#allocation6 + $0x5e]]
    %v1579 = vstv %s1577
    %v1580 = vmul.f32 %v1579, %v182
    %v1581 = vstv %s1578
    %v1582 = vmul.f32 %v1581, %v183
    %v1583 = vadd.f32 %v1580, %v1582
    %v1586 = vunpack.c.l.s4 1983009808
    %v1587 = vunpack.c.0.s8 %v1586
    %v1588 = vlaneseq
    %v1589 = vshrl.u32 %v1588, 7
    %v1590 = vsub.s32 %v1587, %v1589
    %v1591 = vrot.slane %v1583, %v1590
    %v1592 = vcombine.high %v1591, %v1591
    %1595 = vrot.lane.b32.xlu0 %v1591, 80
    %v1596 = vpop.permute.xlu0 %1595
    %1597 = vrot.lane.b32.xlu0 %v1592, 80
    %v1598 = vpop.permute.xlu0 %1597
    %vm1599 = vcmp.lt.s32.totalorder %v185, 80
    %v1600 = vsel %vm1599, %v1596, %v1598
    %v1601 = vsel %vm1599, %v1598, %v1596
    %v1602 = vsel %vm1482, %v1600, 0.0
    %v1603 = vsel %vm1483, %v1601, 0.0
    %v1604 = vadd.f32 %v1480, %v1602
    %v1605 = vadd.f32 %v1481, %v1603
    %s1606 = sld [smem:[#allocation6 + $0x2e]]
    %s1607 = sld [smem:[#allocation6 + $0x5f]]
    %vm1608 = vmand %vm1482, %vm195
    %vm1609 = vmand %vm1483, %vm196
    %v1610 = vstv %s1606
    %v1611 = vmul.f32 %v1610, %v182
    %v1612 = vstv %s1607
    %v1613 = vmul.f32 %v1612, %v183
    %v1614 = vadd.f32 %v1611, %v1613
    %v1617 = vunpack.c.l.s4 1983009808
    %v1618 = vunpack.c.0.s8 %v1617
    %v1619 = vlaneseq
    %v1620 = vshrl.u32 %v1619, 7
    %v1621 = vsub.s32 %v1618, %v1620
    %v1622 = vrot.slane %v1614, %v1621
    %v1623 = vcombine.high %v1622, %v1622
    %1626 = vrot.lane.b32.xlu0 %v1622, 79
    %v1627 = vpop.permute.xlu0 %1626
    %1628 = vrot.lane.b32.xlu0 %v1623, 79
    %v1629 = vpop.permute.xlu0 %1628
    %vm1630 = vcmp.lt.s32.totalorder %v185, 79
    %v1631 = vsel %vm1630, %v1627, %v1629
    %v1632 = vsel %vm1630, %v1629, %v1627
    %v1633 = vsel %vm1608, %v1631, 0.0
    %v1634 = vsel %vm1609, %v1632, 0.0
    %v1635 = vadd.f32 %v1513, %v1633
    %v1636 = vadd.f32 %v1514, %v1634
    %s1637 = sld [smem:[#allocation6 + $0x2f]]
    %s1638 = sld [smem:[#allocation6 + $0x60]]
    %vm1639 = vmand %vm1482, %vm197
    %vm1640 = vmand %vm1483, %vm198
    %v1641 = vstv %s1637
    %v1642 = vmul.f32 %v1641, %v182
    %v1643 = vstv %s1638
    %v1644 = vmul.f32 %v1643, %v183
    %v1645 = vadd.f32 %v1642, %v1644
    %v1648 = vunpack.c.l.s4 1983009808
    %v1649 = vunpack.c.0.s8 %v1648
    %v1650 = vlaneseq
    %v1651 = vshrl.u32 %v1650, 7
    %v1652 = vsub.s32 %v1649, %v1651
    %v1653 = vrot.slane %v1645, %v1652
    %v1654 = vcombine.high %v1653, %v1653
    %1657 = vrot.lane.b32.xlu0 %v1653, 78
    %v1658 = vpop.permute.xlu0 %1657
    %1659 = vrot.lane.b32.xlu0 %v1654, 78
    %v1660 = vpop.permute.xlu0 %1659
    %vm1661 = vcmp.lt.s32.totalorder %v185, 78
    %v1662 = vsel %vm1661, %v1658, %v1660
    %v1663 = vsel %vm1661, %v1660, %v1658
    %v1664 = vsel %vm1639, %v1662, 0.0
    %v1665 = vsel %vm1640, %v1663, 0.0
    %v1666 = vadd.f32 %v1544, %v1664
    %v1667 = vadd.f32 %v1545, %v1665
    %s1668 = sld [smem:[#allocation6 + $0x30]]
    %s1669 = sld [smem:[#allocation6 + $0x61]]
    %vm1670 = vmand %vm1482, %vm199
    %vm1671 = vmand %vm1483, %vm200
    %v1672 = vstv %s1668
    %v1673 = vmul.f32 %v1672, %v182
    %v1674 = vstv %s1669
    %v1675 = vmul.f32 %v1674, %v183
    %v1676 = vadd.f32 %v1673, %v1675
    %v1679 = vunpack.c.l.s4 1983009808
    %v1680 = vunpack.c.0.s8 %v1679
    %v1681 = vlaneseq
    %v1682 = vshrl.u32 %v1681, 7
    %v1683 = vsub.s32 %v1680, %v1682
    %v1684 = vrot.slane %v1676, %v1683
    %v1685 = vcombine.high %v1684, %v1684
    %1688 = vrot.lane.b32.xlu0 %v1684, 77
    %v1689 = vpop.permute.xlu0 %1688
    %1690 = vrot.lane.b32.xlu0 %v1685, 77
    %v1691 = vpop.permute.xlu0 %1690
    %vm1692 = vcmp.lt.s32.totalorder %v185, 77
    %v1693 = vsel %vm1692, %v1689, %v1691
    %v1694 = vsel %vm1692, %v1691, %v1689
    %v1695 = vsel %vm1670, %v1693, 0.0
    %v1696 = vsel %vm1671, %v1694, 0.0
    %v1697 = vadd.f32 %v1575, %v1695
    %v1698 = vadd.f32 %v1576, %v1696
    %v1699 = vadd.f32 %v1697, %v1604
    %v1700 = vadd.f32 %v1698, %v1605
    %v1701 = vadd.f32 %v1635, %v1666
    %v1702 = vadd.f32 %v1636, %v1667
    %v1703 = vadd.f32 %v1699, %v1701
    %v1704 = vadd.f32 %v1700, %v1702
    %v1705 = vxor.u32 %v1703, 2147483648
    %v1706 = vxor.u32 %v1704, 2147483648
    %v1707 = vmul.f32 %v1705, 1.442695
    %v1708 = vpow.pop %v1707
    %v1709 = vmul.f32 %v1706, 1.442695
    %v1710 = vpow.pop %v1709
    %v1711 = vadd.f32 %v1708, 1.0
    %v1712 = vadd.f32 %v1710, 1.0
    %v1713 = vrcp.pop %v1711
    %v1714 = vmul.f32 1.0, %v1713
    %v1715 = vrcp.pop %v1712
    %v1716 = vmul.f32 1.0, %v1715
    %v1719 = vcombine.low %v1714, %v1716
    %v1721 = vunpack.c.l.s4 1983009808
    %v1722 = vunpack.c.0.s8 %v1721
    %v1723 = vlaneseq
    %v1724 = vshrl.u32 %v1723, 7
    %v1725 = vsub.s32 %v1722, %v1724
    %v1726 = vrot.slane %v1719, %v1725
    %1728 = vst [vmem:[#allocation4] sm:$0xf] %v1726
    %1729 = vst [vmem:[%s4] sm:$0xf] %v1726
    %v1730 = vld [vmem:[%s2] sm:$0xff]
    %v1731 = vld [vmem:[#allocation4] ss:$2 sm:$0x3]
    %v1733 = vlaneseq
    %v1734 = vshrl.u32 %v1733, 7
    %v1735 = vsub.s32 0, %v1734
    %v1736 = vrot.slane %v1731, %v1735
    %v1737 = vlaneseq
    %v1738 = vshrl.u32 %v1737, 7
    %v1739 = vsub.s32 1, %v1738
    %v1740 = vrot.slane %v1731, %v1739
    %v1741 = vcombine.low %v1736, %v1740
    %v1743 = vmul.f32 %v1730, %v1741
    %1744 = vst [vmem:[%s3] sm:$0xff] %v1743
    %v1745 = vld [vmem:[%s107] sm:$0xff]
    %s1746 = scalar_lea.vmem [#allocation4], 1
    %v1747 = vld [vmem:[%s1746] ss:$2 sm:$0x3]
    %v1749 = vlaneseq
    %v1750 = vshrl.u32 %v1749, 7
    %v1751 = vsub.s32 0, %v1750
    %v1752 = vrot.slane %v1747, %v1751
    %v1753 = vlaneseq
    %v1754 = vshrl.u32 %v1753, 7
    %v1755 = vsub.s32 1, %v1754
    %v1756 = vrot.slane %v1747, %v1755
    %v1757 = vcombine.low %v1752, %v1756
    %v1759 = vmul.f32 %v1745, %v1757
    %s1760 = scalar_lea.vmem %s3, 8
    %1761 = vst [vmem:[%s1760] sm:$0xff] %v1759
    // Predicated region
    $region18: #{spatial_attention.1} parent=1 // pred_check
      _
    $region19: #{spatial_attention.1} parent=1 // pred_check_branch
      %1763 = sbr.rel (0) target = $region21
    $region20: #{spatial_attention.1} parent=1 // pred_region
      _
    $region21: #{spatial_attention.1} parent=1 // pred_fallthru
      _
    // Predicated region
    $region22: #{spatial_attention.1} parent=1 // pred_check
      _
    $region23: #{spatial_attention.1} parent=1 // pred_check_branch
      %1765 = sbr.rel (0) target = $region25
    $region24: #{spatial_attention.1} parent=1 // pred_region
      _
    $region25: #{spatial_attention.1} parent=1 // pred_fallthru
      _
    // Predicated region
    $region26: #{spatial_attention.1} parent=1 // pred_check
      _
    $region27: #{spatial_attention.1} parent=1 // pred_check_branch
      %1767 = sbr.rel (0) target = $region29
    $region28: #{spatial_attention.1} parent=1 // pred_region
      _
    $region29: #{spatial_attention.1} parent=1 // pred_fallthru
      _
    // Predicated region
    $region30: #{spatial_attention.1} parent=1 // pred_check
      _
    $region31: #{spatial_attention.1} parent=1 // pred_check_branch
      %1769 = sbr.rel (0) target = $region33
    $region32: #{spatial_attention.1} parent=1 // pred_region
      _
    $region33: #{spatial_attention.1} parent=1 // pred_fallthru
      _
    %1770 = vsyncpa [#allocation7], 1

</llo_original>
